<compile_context>
chip_gen: v7x
topology: tpu7x:2x2x1
jax: 0.10.0
libtpu: 0.0.40
codegen_flags: <defaults>
</compile_context>

<pallas_src>
import math
import functools

import jax
import jax.numpy as jnp
import numpy as np
from jax.experimental import pallas as pl
from jax.experimental.pallas import tpu as pltpu

EPS = 1e-6


def _recip(x, approx):
    return pl.reciprocal(x, approx=True) if approx else 1.0 / x


def _layer_norm(y, a, b, d, approx):
    """torch-style LayerNorm: a * (y - mean) / (std_unbiased + eps) + b."""
    mean = jnp.mean(y, axis=-1, keepdims=True)
    yc = y - mean
    var = jnp.sum(yc * yc, axis=-1, keepdims=True) * (1.0 / (d - 1))  # unbiased (ddof=1)
    std = jnp.sqrt(var)
    return a * yc * _recip(std + EPS, approx) + b


def encoder_layer_kernel(x_ref, mb_ref, vec_ref, bkv_ref, b1_ref,
                         wq_ref, wkv_ref, wo_ref, w1_ref, w2_ref,
                         o_ref,
                         yln_scr, kv_scr, ctx_scr,
                         *, num_heads, q_tile, approx_recip):
    S, D = x_ref.shape
    dk = D // num_heads
    mm = wq_ref.dtype                       # matmul-operand dtype (bf16)
    qi = pl.program_id(1)

    ln1_a = vec_ref[0:1]                    # (1, D)
    ln1_b = vec_ref[1:2]

    # ---- once per batch row: LN over the full sequence + fused K/V projection,
    #      cached in VMEM scratch for all query tiles of this row. ----
    @pl.when(qi == 0)
    def _():
        y_all = _layer_norm(x_ref[...], ln1_a, ln1_b, D, approx_recip)     # (S, D) f32
        yln_scr[...] = y_all
        kv = jnp.dot(y_all.astype(mm), wkv_ref[...],
                     preferred_element_type=jnp.float32) + bkv_ref[...]    # (S, 2D) f32
        kv_scr[...] = kv.astype(mm)

    # ---- per query tile ----
    if q_tile == S:                         # static branch: single tile
        x_q = x_ref[...]
        y_q = yln_scr[...]
    else:
        q_start = pl.multiple_of(qi * q_tile, q_tile)
        x_q = x_ref[pl.ds(q_start, q_tile), :]
        y_q = yln_scr[pl.ds(q_start, q_tile), :]   # slice cached LN (no recompute)

    # Fused, lane-dense query projection; 1/sqrt(dk) folded into wq / bq already.
    q_all = (jnp.dot(y_q.astype(mm), wq_ref[...],
                     preferred_element_type=jnp.float32) + vec_ref[4:5]).astype(mm)

    # Additive key mask (0 / -1e9), hoisted out of the head loop.
    mbias = jnp.broadcast_to(mb_ref[...], (q_tile, S))

    # Per-head attention (static unroll; H is small).  Heads are dk-wide lane slices of
    # the fused Q / K / V slabs; per-head context lands in a (q_tile, D) scratch so the
    # output projection is a single D-wide matmul.
    for h in range(num_heads):
        lo = h * dk
        qh = q_all[:, lo:lo + dk]                       # (q_tile, dk) bf16
        kh = kv_scr[:, lo:lo + dk]                      # (S, dk)      bf16
        vh = kv_scr[:, D + lo:D + lo + dk]              # (S, dk)      bf16
        s = jax.lax.dot_general(qh, kh, (((1,), (1,)), ((), ())),
                                preferred_element_type=jnp.float32)      # (q_tile, S)
        s = s + mbias
        s = s - jnp.max(s, axis=-1, keepdims=True)
        p = jnp.exp(s)
        p = p * _recip(jnp.sum(p, axis=-1, keepdims=True), approx_recip)
        ctx_scr[:, lo:lo + dk] = jnp.dot(
            p.astype(mm), vh, preferred_element_type=jnp.float32).astype(mm)

    attn = jnp.dot(ctx_scr[...], wo_ref[...],
                   preferred_element_type=jnp.float32) + vec_ref[5:6]    # + b_o

    # residual 0 (dropout = identity in eval mode)
    x1 = x_q + attn

    # ---- feed-forward sublayer with pre-norm + residual ----
    y2 = _layer_norm(x1, vec_ref[2:3], vec_ref[3:4], D, approx_recip)
    h1 = jnp.maximum(
        jnp.dot(y2.astype(mm), w1_ref[...], preferred_element_type=jnp.float32)
        + b1_ref[...], 0.0)
    ff = jnp.dot(h1.astype(mm), w2_ref[...],
                 preferred_element_type=jnp.float32) + vec_ref[6:7]      # + b_2
    o_ref[...] = (x1 + ff).astype(o_ref.dtype)


def _vmem_limit_bytes():
    try:
        cap = int(pltpu.get_tpu_info().vmem_capacity_bytes)
        return min(cap * 3 // 4, 96 * 1024 * 1024)
    except Exception:
        return 64 * 1024 * 1024


def _pick_q_tile(S, D):
    """Bigger tiles on 128-MiB-VMEM chips (v5e/v6e), capped at 256 on v7x (64 MiB)."""
    if D % 128 != 0 or S <= 128:
        return S
    cap = 512
    try:
        if int(pltpu.get_tpu_info().vmem_capacity_bytes) <= 64 * 1024 * 1024:
            cap = 256
    except Exception:
        pass
    for cand in (cap, 256, 128):
        if cand <= S and S % cand == 0:
            return cand
    return S


def encoder_layer(x, mask, params, num_heads, *, q_tile=None,
                  matmul_dtype=jnp.bfloat16, approx_recip=True, out_dtype=None):
    B, S, D = x.shape
    dff = params["w1"].shape[1]
    dk = D // num_heads
    assert num_heads * dk == D
    f32 = jnp.float32
    mm = matmul_dtype
    out_dtype = x.dtype if out_dtype is None else out_dtype

    if q_tile is None:
        q_tile = _pick_q_tile(S, D)
    if S % q_tile != 0 or (q_tile != S and (q_tile % 8 != 0 or D % 128 != 0)):
        q_tile = S
    n_q = S // q_tile

    scale = 1.0 / math.sqrt(dk)

    # Packed head-independent vectors: ln1_a, ln1_b, ln2_a, ln2_b, bq*scale, bo, b2.
    vecs = jnp.concatenate(
        [params["ln1_a"], params["ln1_b"], params["ln2_a"], params["ln2_b"],
         params["bq"] * scale, params["bo"], params["b2"]], axis=0).astype(f32)  # (7, D)

    wq = (params["wq"] * scale).astype(mm)                                   # (D, D)
    wkv = jnp.concatenate([params["wk"], params["wv"]], axis=1).astype(mm)   # (D, 2D)
    bkv = jnp.concatenate([params["bk"], params["bv"]], axis=1).astype(f32)  # (1, 2D)
    wo = params["wo"].astype(mm)                                             # (D, D)
    w1 = params["w1"].astype(mm)                                             # (D, dff)
    w2 = params["w2"].astype(mm)                                             # (dff, D)
    b1 = params["b1"].astype(f32)                                            # (1, dff)

    # Additive attention-mask bias (0 where visible, -1e9 where masked).
    mask_bias = jnp.where(mask == 0.0, -1e9, 0.0).astype(f32)                # (B, 1, S)

    def const(shape):
        n = len(shape)
        return pl.BlockSpec(shape, lambda b, qi, _n=n: (0,) * _n)

    in_specs = [
        pl.BlockSpec((None, S, D), lambda b, qi: (b, 0, 0)),   # x (full sequence)
        pl.BlockSpec((None, 1, S), lambda b, qi: (b, 0, 0)),   # additive mask bias
        const((7, D)),          # packed LN / bias vectors
        const((1, 2 * D)),      # bk || bv
        const((1, dff)),        # b1
        const((D, D)),          # wq * scale
        const((D, 2 * D)),      # wk || wv (fused, lane-dense)
        const((D, D)),          # wo
        const((D, dff)),        # w1
        const((dff, D)),        # w2
    ]

    scratch_shapes = [
        pltpu.VMEM((S, D), f32),       # cached LayerNorm(x) for the whole sequence
        pltpu.VMEM((S, 2 * D), mm),    # cached fused K || V projection
        pltpu.VMEM((q_tile, D), mm),   # per-head context slabs -> single W_o matmul
    ]

    return pl.pallas_call(
        functools.partial(encoder_layer_kernel, num_heads=num_heads,
                          q_tile=q_tile, approx_recip=approx_recip),
        out_shape=jax.ShapeDtypeStruct((B, S, D), out_dtype),
        grid=(B, n_q),
        in_specs=in_specs,
        out_specs=pl.BlockSpec((None, q_tile, D), lambda b, qi: (b, qi, 0)),
        scratch_shapes=scratch_shapes,
        compiler_params=pltpu.CompilerParams(
            dimension_semantics=("parallel", "arbitrary"),
            vmem_limit_bytes=_vmem_limit_bytes()),
    )(x, mask_bias, vecs, bkv, b1, wq, wkv, wo, w1, w2)


def encoder_layer_ref(x, mask, params, num_heads):
    """Pure-JAX f32 reference matching the PyTorch module (eval mode)."""
    B, S, D = x.shape
    dk = D // num_heads

    def ln(y, a, b):
        mean = jnp.mean(y, axis=-1, keepdims=True)
        std = jnp.sqrt(jnp.sum((y - mean) ** 2, axis=-1, keepdims=True) / (D - 1))
        return a * (y - mean) / (std + EPS) + b

    y = ln(x, params["ln1_a"], params["ln1_b"])
    q = y @ params["wq"] + params["bq"]
    k = y @ params["wk"] + params["bk"]
    v = y @ params["wv"] + params["bv"]
    q = q.reshape(B, S, num_heads, dk).transpose(0, 2, 1, 3)
    k = k.reshape(B, S, num_heads, dk).transpose(0, 2, 1, 3)
    v = v.reshape(B, S, num_heads, dk).transpose(0, 2, 1, 3)
    s = jnp.einsum("bhqd,bhkd->bhqk", q, k) / math.sqrt(dk)
    s = jnp.where(mask[:, None, :, :] == 0.0, -1e9, s)
    p = jax.nn.softmax(s, axis=-1)
    attn = jnp.einsum("bhqk,bhkd->bhqd", p, v).transpose(0, 2, 1, 3).reshape(B, S, D)
    x1 = x + (attn @ params["wo"] + params["bo"])
    y2 = ln(x1, params["ln2_a"], params["ln2_b"])
    ff = jnp.maximum(y2 @ params["w1"] + params["b1"], 0.0) @ params["w2"] + params["b2"]
    return x1 + ff


if __name__ == "__main__":
    B, S, D, H, DFF = 2, 16, 128, 4, 256

    key = jax.random.PRNGKey(0)
    ks = jax.random.split(key, 17)

    params = {
        "ln1_a": 1.0 + 0.1 * jax.random.normal(ks[12], (1, D), jnp.float32),
        "ln1_b": 0.05 * jax.random.normal(ks[13], (1, D), jnp.float32),
        "wq": jax.random.normal(ks[0], (D, D), jnp.float32) * 0.05,
        "bq": jax.random.normal(ks[1], (1, D), jnp.float32) * 0.01,
        "wk": jax.random.normal(ks[2], (D, D), jnp.float32) * 0.05,
        "bk": jax.random.normal(ks[3], (1, D), jnp.float32) * 0.01,
        "wv": jax.random.normal(ks[4], (D, D), jnp.float32) * 0.05,
        "bv": jax.random.normal(ks[5], (1, D), jnp.float32) * 0.01,
        "wo": jax.random.normal(ks[6], (D, D), jnp.float32) * 0.05,
        "bo": jax.random.normal(ks[7], (1, D), jnp.float32) * 0.01,
        "ln2_a": 1.0 + 0.1 * jax.random.normal(ks[14], (1, D), jnp.float32),
        "ln2_b": 0.05 * jax.random.normal(ks[15], (1, D), jnp.float32),
        "w1": jax.random.normal(ks[8], (D, DFF), jnp.float32) * 0.05,
        "b1": jax.random.normal(ks[9], (1, DFF), jnp.float32) * 0.01,
        "w2": jax.random.normal(ks[10], (DFF, D), jnp.float32) * 0.05,
        "b2": jax.random.normal(ks[11], (1, D), jnp.float32) * 0.01,
    }

    x = jax.random.normal(ks[16], (B, S, D), jnp.float32)
    # mask: batch 0 attends to the first 10 tokens, batch 1 to all S
    lengths = jnp.array([10, S])
    mask = (jnp.arange(S)[None, None, :] < lengths[:, None, None]).astype(jnp.float32)

    out = encoder_layer(x, mask, params, num_heads=H)
    out = jax.block_until_ready(out)

    ref = encoder_layer_ref(x, mask, params, num_heads=H)
    # bf16 MXU operands + approx (EUP) reciprocals -> looser tolerance than pure-f32.
    np.testing.assert_allclose(np.asarray(out), np.asarray(ref), rtol=5e-2, atol=5e-2)

    print("KERNEL_OK")
</pallas_src>

<mosaic_0001>
module attributes {stable_mosaic.version = 11 : i64} {
  func.func @encoder_layer_kernel(%arg0: i32, %arg1: i32, %arg2: memref<1x16x128xf32, #tpu.memory_space<vmem>>, %arg3: memref<1x1x16xf32, #tpu.memory_space<vmem>>, %arg4: memref<7x128xf32, #tpu.memory_space<vmem>>, %arg5: memref<1x256xf32, #tpu.memory_space<vmem>>, %arg6: memref<1x256xf32, #tpu.memory_space<vmem>>, %arg7: memref<128x128xbf16, #tpu.memory_space<vmem>>, %arg8: memref<128x256xbf16, #tpu.memory_space<vmem>>, %arg9: memref<128x128xbf16, #tpu.memory_space<vmem>>, %arg10: memref<128x256xbf16, #tpu.memory_space<vmem>>, %arg11: memref<256x128xbf16, #tpu.memory_space<vmem>>, %arg12: memref<1x16x128xf32, #tpu.memory_space<vmem>>, %arg13: memref<16x128xf32, #tpu.memory_space<vmem>>, %arg14: memref<16x256xbf16, #tpu.memory_space<vmem>>, %arg15: memref<16x128xbf16, #tpu.memory_space<vmem>>) attributes {dimension_semantics = [#tpu.dimension_semantics<parallel>, #tpu.dimension_semantics<arbitrary>], iteration_bounds = array<i64: 2, 1>, scalar_prefetch = 0 : i64, scratch_operands = 3 : i64, tpu.core_type = #tpu.core_type<tc>, window_params = [{transform_indices = @transform_0, window_bounds = array<i64: 1, 16, 128>}, {transform_indices = @transform_1, window_bounds = array<i64: 1, 1, 16>}, {pipeline_mode = #tpu.pipeline_mode<synchronous>, transform_indices = @transform_2, window_bounds = array<i64: 7, 128>}, {pipeline_mode = #tpu.pipeline_mode<synchronous>, transform_indices = @transform_3, window_bounds = array<i64: 1, 256>}, {pipeline_mode = #tpu.pipeline_mode<synchronous>, transform_indices = @transform_4, window_bounds = array<i64: 1, 256>}, {pipeline_mode = #tpu.pipeline_mode<synchronous>, transform_indices = @transform_5, window_bounds = array<i64: 128, 128>}, {pipeline_mode = #tpu.pipeline_mode<synchronous>, transform_indices = @transform_6, window_bounds = array<i64: 128, 256>}, {pipeline_mode = #tpu.pipeline_mode<synchronous>, transform_indices = @transform_7, window_bounds = array<i64: 128, 128>}, {pipeline_mode = #tpu.pipeline_mode<synchronous>, transform_indices = @transform_8, window_bounds = array<i64: 128, 256>}, {pipeline_mode = #tpu.pipeline_mode<synchronous>, transform_indices = @transform_9, window_bounds = array<i64: 256, 128>}, {transform_indices = @transform_10, window_bounds = array<i64: 1, 16, 128>}]} {
    %c0 = arith.constant 0 : index
    %c0_0 = arith.constant 0 : index
    %0 = vector.load %arg4[%c0, %c0_0] : memref<7x128xf32, #tpu.memory_space<vmem>>, vector<1x128xf32>
    %c1 = arith.constant 1 : index
    %c0_1 = arith.constant 0 : index
    %1 = vector.load %arg4[%c1, %c0_1] : memref<7x128xf32, #tpu.memory_space<vmem>>, vector<1x128xf32>
    %c0_i32 = arith.constant 0 : i32
    %2 = arith.cmpi eq, %arg1, %c0_i32 : i32
    %3 = arith.extui %2 : i1 to i32
    %c0_i32_2 = arith.constant 0 : i32
    %4 = arith.cmpi ne, %3, %c0_i32_2 : i32
    scf.if %4 {
      %c0_73 = arith.constant 0 : index
      %c0_74 = arith.constant 0 : index
      %c0_75 = arith.constant 0 : index
      %143 = vector.load %arg2[%c0_73, %c0_74, %c0_75] : memref<1x16x128xf32, #tpu.memory_space<vmem>>, vector<1x16x128xf32>
      %144 = vector.shape_cast %143 : vector<1x16x128xf32> to vector<16x128xf32>
      %cst_76 = arith.constant dense<0.000000e+00> : vector<16xf32>
      %145 = vector.multi_reduction <add>, %144, %cst_76 [1] : vector<16x128xf32> to vector<16xf32>
      %146 = vector.shape_cast %145 : vector<16xf32> to vector<16x1xf32>
      %cst_77 = arith.constant 1.280000e+02 : f32
      %147 = vector.broadcast %cst_77 : f32 to vector<16x1xf32>
      %148 = arith.divf %146, %147 : vector<16x1xf32>
      %149 = vector.broadcast %148 : vector<16x1xf32> to vector<16x128xf32>
      %150 = arith.subf %144, %149 : vector<16x128xf32>
      %151 = arith.mulf %150, %150 : vector<16x128xf32>
      %cst_78 = arith.constant dense<0.000000e+00> : vector<16xf32>
      %152 = vector.multi_reduction <add>, %151, %cst_78 [1] : vector<16x128xf32> to vector<16xf32>
      %153 = vector.shape_cast %152 : vector<16xf32> to vector<16x1xf32>
      %cst_79 = arith.constant 0.00787401571 : f32
      %154 = vector.broadcast %cst_79 : f32 to vector<16x1xf32>
      %155 = arith.mulf %153, %154 : vector<16x1xf32>
      %156 = math.sqrt %155 : vector<16x1xf32>
      %157 = vector.broadcast %0 : vector<1x128xf32> to vector<16x128xf32>
      %158 = arith.mulf %157, %150 : vector<16x128xf32>
      %cst_80 = arith.constant 9.99999997E-7 : f32
      %159 = vector.broadcast %cst_80 : f32 to vector<16x1xf32>
      %160 = arith.addf %156, %159 : vector<16x1xf32>
      %161 = tpu.reciprocal %160 {approx = true} : vector<16x1xf32> -> vector<16x1xf32>
      %162 = vector.broadcast %161 : vector<16x1xf32> to vector<16x128xf32>
      %163 = arith.mulf %158, %162 : vector<16x128xf32>
      %164 = vector.broadcast %1 : vector<1x128xf32> to vector<16x128xf32>
      %165 = arith.addf %163, %164 : vector<16x128xf32>
      %c0_81 = arith.constant 0 : index
      %c0_82 = arith.constant 0 : index
      %166 = vector.load %arg13[%c0_81, %c0_82] : memref<16x128xf32, #tpu.memory_space<vmem>>, vector<16x128xf32>
      tpu.vector_store %arg13[%c0_81, %c0_82], %165 {strides = array<i32>} : memref<16x128xf32, #tpu.memory_space<vmem>>, vector<16x128xf32>,
      %167 = arith.truncf %165 : vector<16x128xf32> to vector<16x128xbf16>
      %c0_83 = arith.constant 0 : index
      %c0_84 = arith.constant 0 : index
      %168 = vector.load %arg8[%c0_83, %c0_84] : memref<128x256xbf16, #tpu.memory_space<vmem>>, vector<128x256xbf16>
      %cst_85 = arith.constant dense<0.000000e+00> : vector<16x256xf32>
      %169 = tpu.matmul %167, %168, %cst_85 {dimension_numbers = #tpu.dot_dimension_numbers<[1], [0], [0], [1], [0, 0, 1, 1], [], []>} : vector<16x128xbf16>, vector<128x256xbf16>, vector<16x256xf32> -> vector<16x256xf32>
      %c0_86 = arith.constant 0 : index
      %c0_87 = arith.constant 0 : index
      %170 = vector.load %arg5[%c0_86, %c0_87] : memref<1x256xf32, #tpu.memory_space<vmem>>, vector<1x256xf32>
      %171 = vector.broadcast %170 : vector<1x256xf32> to vector<16x256xf32>
      %172 = arith.addf %169, %171 : vector<16x256xf32>
      %173 = arith.truncf %172 : vector<16x256xf32> to vector<16x256xbf16>
      %c0_88 = arith.constant 0 : index
      %c0_89 = arith.constant 0 : index
      %174 = vector.load %arg14[%c0_88, %c0_89] : memref<16x256xbf16, #tpu.memory_space<vmem>>, vector<16x256xbf16>
      tpu.vector_store %arg14[%c0_88, %c0_89], %173 {strides = array<i32>} : memref<16x256xbf16, #tpu.memory_space<vmem>>, vector<16x256xbf16>,
    } else {
    }
    %c0_3 = arith.constant 0 : index
    %c0_4 = arith.constant 0 : index
    %c0_5 = arith.constant 0 : index
    %5 = vector.load %arg2[%c0_3, %c0_4, %c0_5] : memref<1x16x128xf32, #tpu.memory_space<vmem>>, vector<1x16x128xf32>
    %6 = vector.shape_cast %5 : vector<1x16x128xf32> to vector<16x128xf32>
    %c0_6 = arith.constant 0 : index
    %c0_7 = arith.constant 0 : index
    %7 = vector.load %arg13[%c0_6, %c0_7] : memref<16x128xf32, #tpu.memory_space<vmem>>, vector<16x128xf32>
    %8 = arith.truncf %7 : vector<16x128xf32> to vector<16x128xbf16>
    %c0_8 = arith.constant 0 : index
    %c0_9 = arith.constant 0 : index
    %9 = vector.load %arg7[%c0_8, %c0_9] : memref<128x128xbf16, #tpu.memory_space<vmem>>, vector<128x128xbf16>
    %cst = arith.constant dense<0.000000e+00> : vector<16x128xf32>
    %10 = tpu.matmul %8, %9, %cst {dimension_numbers = #tpu.dot_dimension_numbers<[1], [0], [0], [1], [0, 0, 1, 1], [], []>} : vector<16x128xbf16>, vector<128x128xbf16>, vector<16x128xf32> -> vector<16x128xf32>
    %c4 = arith.constant 4 : index
    %c0_10 = arith.constant 0 : index
    %11 = vector.load %arg4[%c4, %c0_10] : memref<7x128xf32, #tpu.memory_space<vmem>>, vector<1x128xf32>
    %12 = vector.broadcast %11 : vector<1x128xf32> to vector<16x128xf32>
    %13 = arith.addf %10, %12 : vector<16x128xf32>
    %14 = arith.truncf %13 : vector<16x128xf32> to vector<16x128xbf16>
    %c0_11 = arith.constant 0 : index
    %c0_12 = arith.constant 0 : index
    %c0_13 = arith.constant 0 : index
    %15 = vector.load %arg3[%c0_11, %c0_12, %c0_13] : memref<1x1x16xf32, #tpu.memory_space<vmem>>, vector<1x1x16xf32>
    %16 = vector.shape_cast %15 : vector<1x1x16xf32> to vector<1x16xf32>
    %17 = vector.shape_cast %16 : vector<1x16xf32> to vector<1x16xf32>
    %18 = vector.broadcast %17 : vector<1x16xf32> to vector<16x16xf32>
    %19 = vector.extract_strided_slice %14 {offsets = [0, 0], sizes = [16, 32], strides = [1, 1]} : vector<16x128xbf16> to vector<16x32xbf16>
    %c0_14 = arith.constant 0 : index
    %c0_15 = arith.constant 0 : index
    %20 = vector.load %arg14[%c0_14, %c0_15] : memref<16x256xbf16, #tpu.memory_space<vmem>>, vector<16x32xbf16>
    %c0_16 = arith.constant 0 : index
    %c128 = arith.constant 128 : index
    %21 = vector.load %arg14[%c0_16, %c128] : memref<16x256xbf16, #tpu.memory_space<vmem>>, vector<16x32xbf16>
    %cst_17 = arith.constant dense<0.000000e+00> : vector<16x16xf32>
    %22 = tpu.matmul %19, %20, %cst_17 {dimension_numbers = #tpu.dot_dimension_numbers<[1], [1], [0], [0], [0, 0, 1, 0], [], []>} : vector<16x32xbf16>, vector<16x32xbf16>, vector<16x16xf32> -> vector<16x16xf32>
    %23 = arith.addf %22, %18 : vector<16x16xf32>
    %cst_18 = arith.constant dense<0xFF800000> : vector<16xf32>
    %24 = vector.multi_reduction <maximumf>, %23, %cst_18 [1] : vector<16x16xf32> to vector<16xf32>
    %25 = vector.shape_cast %24 : vector<16xf32> to vector<16x1xf32>
    %26 = vector.broadcast %25 : vector<16x1xf32> to vector<16x16xf32>
    %27 = arith.subf %23, %26 : vector<16x16xf32>
    %28 = math.exp %27 : vector<16x16xf32>
    %cst_19 = arith.constant dense<0.000000e+00> : vector<16xf32>
    %29 = vector.multi_reduction <add>, %28, %cst_19 [1] : vector<16x16xf32> to vector<16xf32>
    %30 = vector.shape_cast %29 : vector<16xf32> to vector<16x1xf32>
    %31 = tpu.reciprocal %30 {approx = true} : vector<16x1xf32> -> vector<16x1xf32>
    %32 = vector.broadcast %31 : vector<16x1xf32> to vector<16x16xf32>
    %33 = arith.mulf %28, %32 : vector<16x16xf32>
    %34 = arith.truncf %33 : vector<16x16xf32> to vector<16x16xbf16>
    %cst_20 = arith.constant dense<0.000000e+00> : vector<16x32xf32>
    %35 = tpu.matmul %34, %21, %cst_20 {dimension_numbers = #tpu.dot_dimension_numbers<[1], [0], [0], [1], [0, 0, 1, 1], [], []>} : vector<16x16xbf16>, vector<16x32xbf16>, vector<16x32xf32> -> vector<16x32xf32>
    %36 = arith.truncf %35 : vector<16x32xf32> to vector<16x32xbf16>
    %c0_21 = arith.constant 0 : index
    %c0_22 = arith.constant 0 : index
    %37 = vector.load %arg15[%c0_21, %c0_22] : memref<16x128xbf16, #tpu.memory_space<vmem>>, vector<16x32xbf16>
    tpu.vector_store %arg15[%c0_21, %c0_22], %36 {strides = array<i32>} : memref<16x128xbf16, #tpu.memory_space<vmem>>, vector<16x32xbf16>,
    %38 = vector.extract_strided_slice %14 {offsets = [0, 32], sizes = [16, 32], strides = [1, 1]} : vector<16x128xbf16> to vector<16x32xbf16>
    %c0_23 = arith.constant 0 : index
    %c32 = arith.constant 32 : index
    %39 = vector.load %arg14[%c0_23, %c32] : memref<16x256xbf16, #tpu.memory_space<vmem>>, vector<16x32xbf16>
    %c0_24 = arith.constant 0 : index
    %c160 = arith.constant 160 : index
    %40 = vector.load %arg14[%c0_24, %c160] : memref<16x256xbf16, #tpu.memory_space<vmem>>, vector<16x32xbf16>
    %cst_25 = arith.constant dense<0.000000e+00> : vector<16x16xf32>
    %41 = tpu.matmul %38, %39, %cst_25 {dimension_numbers = #tpu.dot_dimension_numbers<[1], [1], [0], [0], [0, 0, 1, 0], [], []>} : vector<16x32xbf16>, vector<16x32xbf16>, vector<16x16xf32> -> vector<16x16xf32>
    %42 = arith.addf %41, %18 : vector<16x16xf32>
    %cst_26 = arith.constant dense<0xFF800000> : vector<16xf32>
    %43 = vector.multi_reduction <maximumf>, %42, %cst_26 [1] : vector<16x16xf32> to vector<16xf32>
    %44 = vector.shape_cast %43 : vector<16xf32> to vector<16x1xf32>
    %45 = vector.broadcast %44 : vector<16x1xf32> to vector<16x16xf32>
    %46 = arith.subf %42, %45 : vector<16x16xf32>
    %47 = math.exp %46 : vector<16x16xf32>
    %cst_27 = arith.constant dense<0.000000e+00> : vector<16xf32>
    %48 = vector.multi_reduction <add>, %47, %cst_27 [1] : vector<16x16xf32> to vector<16xf32>
    %49 = vector.shape_cast %48 : vector<16xf32> to vector<16x1xf32>
    %50 = tpu.reciprocal %49 {approx = true} : vector<16x1xf32> -> vector<16x1xf32>
    %51 = vector.broadcast %50 : vector<16x1xf32> to vector<16x16xf32>
    %52 = arith.mulf %47, %51 : vector<16x16xf32>
    %53 = arith.truncf %52 : vector<16x16xf32> to vector<16x16xbf16>
    %cst_28 = arith.constant dense<0.000000e+00> : vector<16x32xf32>
    %54 = tpu.matmul %53, %40, %cst_28 {dimension_numbers = #tpu.dot_dimension_numbers<[1], [0], [0], [1], [0, 0, 1, 1], [], []>} : vector<16x16xbf16>, vector<16x32xbf16>, vector<16x32xf32> -> vector<16x32xf32>
    %55 = arith.truncf %54 : vector<16x32xf32> to vector<16x32xbf16>
    %c0_29 = arith.constant 0 : index
    %c32_30 = arith.constant 32 : index
    %56 = vector.load %arg15[%c0_29, %c32_30] : memref<16x128xbf16, #tpu.memory_space<vmem>>, vector<16x32xbf16>
    tpu.vector_store %arg15[%c0_29, %c32_30], %55 {strides = array<i32>} : memref<16x128xbf16, #tpu.memory_space<vmem>>, vector<16x32xbf16>,
    %57 = vector.extract_strided_slice %14 {offsets = [0, 64], sizes = [16, 32], strides = [1, 1]} : vector<16x128xbf16> to vector<16x32xbf16>
    %c0_31 = arith.constant 0 : index
    %c64 = arith.constant 64 : index
    %58 = vector.load %arg14[%c0_31, %c64] : memref<16x256xbf16, #tpu.memory_space<vmem>>, vector<16x32xbf16>
    %c0_32 = arith.constant 0 : index
    %c192 = arith.constant 192 : index
    %59 = vector.load %arg14[%c0_32, %c192] : memref<16x256xbf16, #tpu.memory_space<vmem>>, vector<16x32xbf16>
    %cst_33 = arith.constant dense<0.000000e+00> : vector<16x16xf32>
    %60 = tpu.matmul %57, %58, %cst_33 {dimension_numbers = #tpu.dot_dimension_numbers<[1], [1], [0], [0], [0, 0, 1, 0], [], []>} : vector<16x32xbf16>, vector<16x32xbf16>, vector<16x16xf32> -> vector<16x16xf32>
    %61 = arith.addf %60, %18 : vector<16x16xf32>
    %cst_34 = arith.constant dense<0xFF800000> : vector<16xf32>
    %62 = vector.multi_reduction <maximumf>, %61, %cst_34 [1] : vector<16x16xf32> to vector<16xf32>
    %63 = vector.shape_cast %62 : vector<16xf32> to vector<16x1xf32>
    %64 = vector.broadcast %63 : vector<16x1xf32> to vector<16x16xf32>
    %65 = arith.subf %61, %64 : vector<16x16xf32>
    %66 = math.exp %65 : vector<16x16xf32>
    %cst_35 = arith.constant dense<0.000000e+00> : vector<16xf32>
    %67 = vector.multi_reduction <add>, %66, %cst_35 [1] : vector<16x16xf32> to vector<16xf32>
    %68 = vector.shape_cast %67 : vector<16xf32> to vector<16x1xf32>
    %69 = tpu.reciprocal %68 {approx = true} : vector<16x1xf32> -> vector<16x1xf32>
    %70 = vector.broadcast %69 : vector<16x1xf32> to vector<16x16xf32>
    %71 = arith.mulf %66, %70 : vector<16x16xf32>
    %72 = arith.truncf %71 : vector<16x16xf32> to vector<16x16xbf16>
    %cst_36 = arith.constant dense<0.000000e+00> : vector<16x32xf32>
    %73 = tpu.matmul %72, %59, %cst_36 {dimension_numbers = #tpu.dot_dimension_numbers<[1], [0], [0], [1], [0, 0, 1, 1], [], []>} : vector<16x16xbf16>, vector<16x32xbf16>, vector<16x32xf32> -> vector<16x32xf32>
    %74 = arith.truncf %73 : vector<16x32xf32> to vector<16x32xbf16>
    %c0_37 = arith.constant 0 : index
    %c64_38 = arith.constant 64 : index
    %75 = vector.load %arg15[%c0_37, %c64_38] : memref<16x128xbf16, #tpu.memory_space<vmem>>, vector<16x32xbf16>
    tpu.vector_store %arg15[%c0_37, %c64_38], %74 {strides = array<i32>} : memref<16x128xbf16, #tpu.memory_space<vmem>>, vector<16x32xbf16>,
    %76 = vector.extract_strided_slice %14 {offsets = [0, 96], sizes = [16, 32], strides = [1, 1]} : vector<16x128xbf16> to vector<16x32xbf16>
    %c0_39 = arith.constant 0 : index
    %c96 = arith.constant 96 : index
    %77 = vector.load %arg14[%c0_39, %c96] : memref<16x256xbf16, #tpu.memory_space<vmem>>, vector<16x32xbf16>
    %c0_40 = arith.constant 0 : index
    %c224 = arith.constant 224 : index
    %78 = vector.load %arg14[%c0_40, %c224] : memref<16x256xbf16, #tpu.memory_space<vmem>>, vector<16x32xbf16>
    %cst_41 = arith.constant dense<0.000000e+00> : vector<16x16xf32>
    %79 = tpu.matmul %76, %77, %cst_41 {dimension_numbers = #tpu.dot_dimension_numbers<[1], [1], [0], [0], [0, 0, 1, 0], [], []>} : vector<16x32xbf16>, vector<16x32xbf16>, vector<16x16xf32> -> vector<16x16xf32>
    %80 = arith.addf %79, %18 : vector<16x16xf32>
    %cst_42 = arith.constant dense<0xFF800000> : vector<16xf32>
    %81 = vector.multi_reduction <maximumf>, %80, %cst_42 [1] : vector<16x16xf32> to vector<16xf32>
    %82 = vector.shape_cast %81 : vector<16xf32> to vector<16x1xf32>
    %83 = vector.broadcast %82 : vector<16x1xf32> to vector<16x16xf32>
    %84 = arith.subf %80, %83 : vector<16x16xf32>
    %85 = math.exp %84 : vector<16x16xf32>
    %cst_43 = arith.constant dense<0.000000e+00> : vector<16xf32>
    %86 = vector.multi_reduction <add>, %85, %cst_43 [1] : vector<16x16xf32> to vector<16xf32>
    %87 = vector.shape_cast %86 : vector<16xf32> to vector<16x1xf32>
    %88 = tpu.reciprocal %87 {approx = true} : vector<16x1xf32> -> vector<16x1xf32>
    %89 = vector.broadcast %88 : vector<16x1xf32> to vector<16x16xf32>
    %90 = arith.mulf %85, %89 : vector<16x16xf32>
    %91 = arith.truncf %90 : vector<16x16xf32> to vector<16x16xbf16>
    %cst_44 = arith.constant dense<0.000000e+00> : vector<16x32xf32>
    %92 = tpu.matmul %91, %78, %cst_44 {dimension_numbers = #tpu.dot_dimension_numbers<[1], [0], [0], [1], [0, 0, 1, 1], [], []>} : vector<16x16xbf16>, vector<16x32xbf16>, vector<16x32xf32> -> vector<16x32xf32>
    %93 = arith.truncf %92 : vector<16x32xf32> to vector<16x32xbf16>
    %c0_45 = arith.constant 0 : index
    %c96_46 = arith.constant 96 : index
    %94 = vector.load %arg15[%c0_45, %c96_46] : memref<16x128xbf16, #tpu.memory_space<vmem>>, vector<16x32xbf16>
    tpu.vector_store %arg15[%c0_45, %c96_46], %93 {strides = array<i32>} : memref<16x128xbf16, #tpu.memory_space<vmem>>, vector<16x32xbf16>,
    %c0_47 = arith.constant 0 : index
    %c0_48 = arith.constant 0 : index
    %95 = vector.load %arg15[%c0_47, %c0_48] : memref<16x128xbf16, #tpu.memory_space<vmem>>, vector<16x128xbf16>
    %c0_49 = arith.constant 0 : index
    %c0_50 = arith.constant 0 : index
    %96 = vector.load %arg9[%c0_49, %c0_50] : memref<128x128xbf16, #tpu.memory_space<vmem>>, vector<128x128xbf16>
    %cst_51 = arith.constant dense<0.000000e+00> : vector<16x128xf32>
    %97 = tpu.matmul %95, %96, %cst_51 {dimension_numbers = #tpu.dot_dimension_numbers<[1], [0], [0], [1], [0, 0, 1, 1], [], []>} : vector<16x128xbf16>, vector<128x128xbf16>, vector<16x128xf32> -> vector<16x128xf32>
    %c5 = arith.constant 5 : index
    %c0_52 = arith.constant 0 : index
    %98 = vector.load %arg4[%c5, %c0_52] : memref<7x128xf32, #tpu.memory_space<vmem>>, vector<1x128xf32>
    %99 = vector.broadcast %98 : vector<1x128xf32> to vector<16x128xf32>
    %100 = arith.addf %97, %99 : vector<16x128xf32>
    %101 = arith.addf %6, %100 : vector<16x128xf32>
    %c2 = arith.constant 2 : index
    %c0_53 = arith.constant 0 : index
    %102 = vector.load %arg4[%c2, %c0_53] : memref<7x128xf32, #tpu.memory_space<vmem>>, vector<1x128xf32>
    %c3 = arith.constant 3 : index
    %c0_54 = arith.constant 0 : index
    %103 = vector.load %arg4[%c3, %c0_54] : memref<7x128xf32, #tpu.memory_space<vmem>>, vector<1x128xf32>
    %cst_55 = arith.constant dense<0.000000e+00> : vector<16xf32>
    %104 = vector.multi_reduction <add>, %101, %cst_55 [1] : vector<16x128xf32> to vector<16xf32>
    %105 = vector.shape_cast %104 : vector<16xf32> to vector<16x1xf32>
    %cst_56 = arith.constant 1.280000e+02 : f32
    %106 = vector.broadcast %cst_56 : f32 to vector<16x1xf32>
    %107 = arith.divf %105, %106 : vector<16x1xf32>
    %108 = vector.broadcast %107 : vector<16x1xf32> to vector<16x128xf32>
    %109 = arith.subf %101, %108 : vector<16x128xf32>
    %110 = arith.mulf %109, %109 : vector<16x128xf32>
    %cst_57 = arith.constant dense<0.000000e+00> : vector<16xf32>
    %111 = vector.multi_reduction <add>, %110, %cst_57 [1] : vector<16x128xf32> to vector<16xf32>
    %112 = vector.shape_cast %111 : vector<16xf32> to vector<16x1xf32>
    %cst_58 = arith.constant 0.00787401571 : f32
    %113 = vector.broadcast %cst_58 : f32 to vector<16x1xf32>
    %114 = arith.mulf %112, %113 : vector<16x1xf32>
    %115 = math.sqrt %114 : vector<16x1xf32>
    %116 = vector.broadcast %102 : vector<1x128xf32> to vector<16x128xf32>
    %117 = arith.mulf %116, %109 : vector<16x128xf32>
    %cst_59 = arith.constant 9.99999997E-7 : f32
    %118 = vector.broadcast %cst_59 : f32 to vector<16x1xf32>
    %119 = arith.addf %115, %118 : vector<16x1xf32>
    %120 = tpu.reciprocal %119 {approx = true} : vector<16x1xf32> -> vector<16x1xf32>
    %121 = vector.broadcast %120 : vector<16x1xf32> to vector<16x128xf32>
    %122 = arith.mulf %117, %121 : vector<16x128xf32>
    %123 = vector.broadcast %103 : vector<1x128xf32> to vector<16x128xf32>
    %124 = arith.addf %122, %123 : vector<16x128xf32>
    %125 = arith.truncf %124 : vector<16x128xf32> to vector<16x128xbf16>
    %c0_60 = arith.constant 0 : index
    %c0_61 = arith.constant 0 : index
    %126 = vector.load %arg10[%c0_60, %c0_61] : memref<128x256xbf16, #tpu.memory_space<vmem>>, vector<128x256xbf16>
    %cst_62 = arith.constant dense<0.000000e+00> : vector<16x256xf32>
    %127 = tpu.matmul %125, %126, %cst_62 {dimension_numbers = #tpu.dot_dimension_numbers<[1], [0], [0], [1], [0, 0, 1, 1], [], []>} : vector<16x128xbf16>, vector<128x256xbf16>, vector<16x256xf32> -> vector<16x256xf32>
    %c0_63 = arith.constant 0 : index
    %c0_64 = arith.constant 0 : index
    %128 = vector.load %arg6[%c0_63, %c0_64] : memref<1x256xf32, #tpu.memory_space<vmem>>, vector<1x256xf32>
    %129 = vector.broadcast %128 : vector<1x256xf32> to vector<16x256xf32>
    %130 = arith.addf %127, %129 : vector<16x256xf32>
    %cst_65 = arith.constant 0.000000e+00 : f32
    %131 = vector.broadcast %cst_65 : f32 to vector<16x256xf32>
    %132 = arith.maximumf %130, %131 : vector<16x256xf32>
    %133 = arith.truncf %132 : vector<16x256xf32> to vector<16x256xbf16>
    %c0_66 = arith.constant 0 : index
    %c0_67 = arith.constant 0 : index
    %134 = vector.load %arg11[%c0_66, %c0_67] : memref<256x128xbf16, #tpu.memory_space<vmem>>, vector<256x128xbf16>
    %cst_68 = arith.constant dense<0.000000e+00> : vector<16x128xf32>
    %135 = tpu.matmul %133, %134, %cst_68 {dimension_numbers = #tpu.dot_dimension_numbers<[1], [0], [0], [1], [0, 0, 1, 1], [], []>} : vector<16x256xbf16>, vector<256x128xbf16>, vector<16x128xf32> -> vector<16x128xf32>
    %c6 = arith.constant 6 : index
    %c0_69 = arith.constant 0 : index
    %136 = vector.load %arg4[%c6, %c0_69] : memref<7x128xf32, #tpu.memory_space<vmem>>, vector<1x128xf32>
    %137 = vector.broadcast %136 : vector<1x128xf32> to vector<16x128xf32>
    %138 = arith.addf %135, %137 : vector<16x128xf32>
    %139 = arith.addf %101, %138 : vector<16x128xf32>
    %c0_70 = arith.constant 0 : index
    %c0_71 = arith.constant 0 : index
    %c0_72 = arith.constant 0 : index
    %140 = vector.load %arg12[%c0_70, %c0_71, %c0_72] : memref<1x16x128xf32, #tpu.memory_space<vmem>>, vector<1x16x128xf32>
    %141 = vector.shape_cast %140 : vector<1x16x128xf32> to vector<16x128xf32>
    %142 = vector.shape_cast %139 : vector<16x128xf32> to vector<1x16x128xf32>
    tpu.vector_store %arg12[%c0_70, %c0_71, %c0_72], %142 {strides = array<i32>} : memref<1x16x128xf32, #tpu.memory_space<vmem>>, vector<1x16x128xf32>,
    return
  }
  func.func @transform_0(%arg0: i32, %arg1: i32) -> (i32, i32, i32) {
    %c0_i32 = arith.constant 0 : i32
    %c0_i32_0 = arith.constant 0 : i32
    %c0_i32_1 = arith.constant 0 : i32
    return %arg0, %c0_i32, %c0_i32_0 : i32, i32, i32
  }
  func.func @transform_1(%arg0: i32, %arg1: i32) -> (i32, i32, i32) {
    %c0_i32 = arith.constant 0 : i32
    %c0_i32_0 = arith.constant 0 : i32
    %c0_i32_1 = arith.constant 0 : i32
    return %arg0, %c0_i32, %c0_i32_0 : i32, i32, i32
  }
  func.func @transform_2(%arg0: i32, %arg1: i32) -> (i32, i32) {
    %c0_i32 = arith.constant 0 : i32
    %c0_i32_0 = arith.constant 0 : i32
    %c0_i32_1 = arith.constant 0 : i32
    return %c0_i32, %c0_i32_0 : i32, i32
  }
  func.func @transform_3(%arg0: i32, %arg1: i32) -> (i32, i32) {
    %c0_i32 = arith.constant 0 : i32
    %c0_i32_0 = arith.constant 0 : i32
    %c0_i32_1 = arith.constant 0 : i32
    return %c0_i32, %c0_i32_0 : i32, i32
  }
  func.func @transform_4(%arg0: i32, %arg1: i32) -> (i32, i32) {
    %c0_i32 = arith.constant 0 : i32
    %c0_i32_0 = arith.constant 0 : i32
    %c0_i32_1 = arith.constant 0 : i32
    return %c0_i32, %c0_i32_0 : i32, i32
  }
  func.func @transform_5(%arg0: i32, %arg1: i32) -> (i32, i32) {
    %c0_i32 = arith.constant 0 : i32
    %c0_i32_0 = arith.constant 0 : i32
    %c0_i32_1 = arith.constant 0 : i32
    return %c0_i32, %c0_i32_0 : i32, i32
  }
  func.func @transform_6(%arg0: i32, %arg1: i32) -> (i32, i32) {
    %c0_i32 = arith.constant 0 : i32
    %c0_i32_0 = arith.constant 0 : i32
    %c0_i32_1 = arith.constant 0 : i32
    return %c0_i32, %c0_i32_0 : i32, i32
  }
  func.func @transform_7(%arg0: i32, %arg1: i32) -> (i32, i32) {
    %c0_i32 = arith.constant 0 : i32
    %c0_i32_0 = arith.constant 0 : i32
    %c0_i32_1 = arith.constant 0 : i32
    return %c0_i32, %c0_i32_0 : i32, i32
  }
  func.func @transform_8(%arg0: i32, %arg1: i32) -> (i32, i32) {
    %c0_i32 = arith.constant 0 : i32
    %c0_i32_0 = arith.constant 0 : i32
    %c0_i32_1 = arith.constant 0 : i32
    return %c0_i32, %c0_i32_0 : i32, i32
  }
  func.func @transform_9(%arg0: i32, %arg1: i32) -> (i32, i32) {
    %c0_i32 = arith.constant 0 : i32
    %c0_i32_0 = arith.constant 0 : i32
    %c0_i32_1 = arith.constant 0 : i32
    return %c0_i32, %c0_i32_0 : i32, i32
  }
  func.func @transform_10(%arg0: i32, %arg1: i32) -> (i32, i32, i32) {
    %c0_i32 = arith.constant 0 : i32
    %c0_i32_0 = arith.constant 0 : i32
    return %arg0, %arg1, %c0_i32 : i32, i32, i32
  }
}

</mosaic_0001>

<llo_original>
// kernel: tpu_custom_call.1
$region0: #{tpu_custom_call.1}
  #allocation0 [shape = 'u32[]', space=smem, size = 0x4, offset = 0x4, fixed_abs, tag = 'smem constant byte address 0x4 - core index']
  #allocation1 [shape = 'u32[144,128]{1,0:T(1,128)}', space=vmem, size = 0x12000, scoped, tag = 'internal scratch']
  #allocation2 [shape = 'f32[16,128]{1,0:T(8,128)}', space=vmem, size = 0x2000, scoped, tag = 'scratch operand']
  #allocation3 [shape = 'bf16[16,256]{1,0:T(16,128)(2,1)}', space=vmem, size = 0x2000, scoped, tag = 'scratch operand']
  #allocation4 [shape = 'bf16[16,128]{1,0:T(16,128)(2,1)}', space=vmem, size = 0x1000, scoped, tag = 'scratch operand']
  %s0 = inlined_call_operand.hbm [shape: f32[2,16,128], index: 0, kind: input, shape index: {}]
  %s1 = inlined_call_operand.hbm [shape: f32[2,1,16], index: 1, kind: input, shape index: {}]
  %s2 = inlined_call_operand.hbm [shape: f32[7,128], index: 2, kind: input, shape index: {}]
  %s3 = inlined_call_operand.hbm [shape: f32[1,256], index: 3, kind: input, shape index: {}]
  %s4 = inlined_call_operand.hbm [shape: f32[1,256], index: 4, kind: input, shape index: {}]
  %s5 = inlined_call_operand.hbm [shape: bf16[128,128], index: 5, kind: input, shape index: {}]
  %s6 = inlined_call_operand.hbm [shape: bf16[128,256], index: 6, kind: input, shape index: {}]
  %s7 = inlined_call_operand.hbm [shape: bf16[128,128], index: 7, kind: input, shape index: {}]
  %s8 = inlined_call_operand.hbm [shape: bf16[128,256], index: 8, kind: input, shape index: {}]
  %s9 = inlined_call_operand.hbm [shape: bf16[256,128], index: 9, kind: input, shape index: {}]
  %s10 = inlined_call_operand.hbm [shape: f32[2,16,128], index: 10, kind: output, shape index: {}]
  %s11 = sld [smem:[#allocation0]]
  $region117: #{tpu_custom_call.1} parent=0
    _
  %s13 = ssub.s32 1, %s11
  %s14 = scalar_select 0, %s13, %s11
  $region1: #{tpu_custom_call.1} parent=0
    #allocation5 [shape = 'u8[16384]{0}', space=vmem, size = 0x4000, scoped, tag = 'input window, operand 0']
    #allocation6 [shape = 's32[2]{0}', space=sflag, size = 0x8, scoped, tag = 'scoped memory for tpu_custom_call.1']
    #allocation7 [shape = 's32[2]{0}', space=sflag, size = 0x8, scoped, tag = 'scoped memory for tpu_custom_call.1']
    #allocation8 [shape = 'u8[1024]{0}', space=vmem, size = 0x400, scoped, tag = 'input window, operand 1']
    #allocation9 [shape = 's32[2]{0}', space=sflag, size = 0x8, scoped, tag = 'scoped memory for tpu_custom_call.1']
    #allocation10 [shape = 'u8[4096]{0}', space=vmem, size = 0x1000, scoped, tag = 'input window, operand 2, single buffered']
    #allocation11 [shape = 'u8[1024]{0}', space=vmem, size = 0x400, scoped, tag = 'input window, operand 3, single buffered']
    #allocation12 [shape = 's32[1]{0}', space=sflag, size = 0x4, scoped, tag = 'scoped memory for tpu_custom_call.1']
    #allocation13 [shape = 'u8[1024]{0}', space=vmem, size = 0x400, scoped, tag = 'input window, operand 4, single buffered']
    #allocation14 [shape = 'u8[32768]{0}', space=vmem, size = 0x8000, scoped, tag = 'input window, operand 5, single buffered']
    #allocation15 [shape = 's32[1]{0}', space=sflag, size = 0x4, scoped, tag = 'scoped memory for tpu_custom_call.1']
    #allocation16 [shape = 'u8[65536]{0}', space=vmem, size = 0x10000, scoped, tag = 'input window, operand 6, single buffered']
    #allocation17 [shape = 'u8[32768]{0}', space=vmem, size = 0x8000, scoped, tag = 'input window, operand 7, single buffered']
    #allocation18 [shape = 's32[1]{0}', space=sflag, size = 0x4, scoped, tag = 'scoped memory for tpu_custom_call.1']
    #allocation19 [shape = 'u8[65536]{0}', space=vmem, size = 0x10000, scoped, tag = 'input window, operand 8, single buffered']
    #allocation20 [shape = 'u8[65536]{0}', space=vmem, size = 0x10000, scoped, tag = 'input window, operand 9, single buffered']
    #allocation21 [shape = 's32[1]{0}', space=sflag, size = 0x4, scoped, tag = 'scoped memory for tpu_custom_call.1']
    #allocation22 [shape = 'u8[16384]{0}', space=vmem, size = 0x4000, scoped, tag = 'output window, operand 0']
    %15 = vsyncpa [#allocation6], 0
    %s16 = scalar_lea.sflag [#allocation6], 1
    %17 = vsyncpa %s16, 0
    %18 = vsyncpa [#allocation9], 0
    %s19 = scalar_lea.sflag [#allocation9], 1
    %20 = vsyncpa %s19, 0
    %21 = vsyncpa [#allocation12], 0
    %22 = vsyncpa [#allocation15], 0
    %23 = vsyncpa [#allocation18], 0
    %24 = vsyncpa [#allocation21], 0
    %25 = vsyncpa [#allocation7], 0
    %s26 = scalar_lea.sflag [#allocation7], 1
    %27 = vsyncpa %s26, 0
    loop: start=0, step=1, limit=4
    $region2: #{tpu_custom_call.1} parent=1 // loop_pre_header
      _
    $region3: #{tpu_custom_call.1} parent=1 // loop_header
      %s29 = sphi 0, %s33
      %p30 = scmp.ge.s32.totalorder %s29, 4
      %s36 = sphi 0, %s48
      %s37 = sphi 0, %s44
      %s38 = sphi 0, %s36
      %s39 = sphi 0, %s37
      %s40 = sphi 0, %s38
      %s41 = sphi 0, %s39
      %s51 = sphi 0, %s53
      %s54 = sphi 0, %s51
      %s55 = sphi 0, %s54
      %s71 = sphi 0, %s55
      %s77 = sphi 0, %s79
      %s80 = sphi 0, %s77
      %s81 = sphi 0, %s80
      %s97 = sphi 0, %s81
      %s101 = sphi 0, %s101
      %s103 = sphi 0, %s101
      %s104 = sphi 0, %s103
      %s118 = sphi 0, %s104
      %s122 = sphi 0, %s122
      %s124 = sphi 0, %s122
      %s125 = sphi 0, %s124
      %s139 = sphi 0, %s125
      %s143 = sphi 0, %s143
      %s145 = sphi 0, %s143
      %s146 = sphi 0, %s145
      %s160 = sphi 0, %s146
      %s164 = sphi 0, %s164
      %s166 = sphi 0, %s164
      %s167 = sphi 0, %s166
      %s181 = sphi 0, %s167
      %s185 = sphi 0, %s185
      %s187 = sphi 0, %s185
      %s188 = sphi 0, %s187
      %s202 = sphi 0, %s188
      %s206 = sphi 0, %s206
      %s208 = sphi 0, %s206
      %s209 = sphi 0, %s208
      %s223 = sphi 0, %s209
      %s227 = sphi 0, %s227
      %s229 = sphi 0, %s227
      %s230 = sphi 0, %s229
      %s244 = sphi 0, %s230
      %s248 = sphi 0, %s248
      %s250 = sphi 0, %s248
      %s251 = sphi 0, %s250
      %s265 = sphi 0, %s251
      %s273 = sphi 0, %s275
      %s276 = sphi 0, %s273
      %s277 = sphi 0, %s276
      %s293 = sphi 0, %s277
    $region4: #{tpu_custom_call.1} parent=1 // loop_header_branch
      %32 = sbr.rel (%p30) target = $region8
    $region5: #{tpu_custom_call.1} parent=1 // loop_body
      %s34 = ssub.s32 %s29, 1
      %s35 = ssub.s32 %s29, 2
      %s42 = sadd.s32 1, %s37
      %p43 = scmp.ge.s32.totalorder %s42, 1
      %s44 = scalar_select %p43, 0, %s42
      %s45 = sadd.s32 1, %s36
      %s46 = scalar_select %p43, %s45, %s36
      %p47 = scmp.ge.s32.totalorder %s46, 2
      %s48 = scalar_select %p47, 0, %s46
      %s49 = ssub.s32 %s36, %s48
      %p50 = scmp.eq.s32.totalorder %s49, 0
      %s52 = sadd.s32 %s51, 1
      %s53 = scalar_select %p50, %s51, %s52
      %p56 = pneg %p50
      %p57 = scmp.eq.s32.totalorder %s29, 1
      %p58 = por %p56, %p57
      %p59 = scmp.ne.s32.totalorder %s51, %s54
      %p60 = scmp.eq.s32.totalorder %s29, 0
      %p61 = por %p59, %p60
      %p62 = scmp.ne.s32.totalorder %s51, %s54
      %p63 = scmp.eq.s32.totalorder %s34, 1
      %p64 = por %p62, %p63
      %p65 = scmp.ne.s32.totalorder %s54, %s55
      %p66 = scmp.eq.s32.totalorder %s34, 0
      %p67 = por %p65, %p66
      %p68 = scmp.ne.s32.totalorder %s54, %s55
      %p69 = scmp.eq.s32.totalorder %s35, 1
      %p70 = por %p68, %p69
      %p72 = scmp.ne.s32.totalorder %s55, %s71
      %p73 = scmp.eq.s32.totalorder %s35, 0
      %p74 = por %p72, %p73
      %s75 = ssub.s32 %s36, %s48
      %p76 = scmp.eq.s32.totalorder %s75, 0
      %s78 = sadd.s32 %s77, 1
      %s79 = scalar_select %p76, %s77, %s78
      %p82 = pneg %p76
      %p83 = scmp.eq.s32.totalorder %s29, 1
      %p84 = por %p82, %p83
      %p85 = scmp.ne.s32.totalorder %s77, %s80
      %p86 = scmp.eq.s32.totalorder %s29, 0
      %p87 = por %p85, %p86
      %p88 = scmp.ne.s32.totalorder %s77, %s80
      %p89 = scmp.eq.s32.totalorder %s34, 1
      %p90 = por %p88, %p89
      %p91 = scmp.ne.s32.totalorder %s80, %s81
      %p92 = scmp.eq.s32.totalorder %s34, 0
      %p93 = por %p91, %p92
      %p94 = scmp.ne.s32.totalorder %s80, %s81
      %p95 = scmp.eq.s32.totalorder %s35, 1
      %p96 = por %p94, %p95
      %p98 = scmp.ne.s32.totalorder %s81, %s97
      %p99 = scmp.eq.s32.totalorder %s35, 0
      %p100 = por %p98, %p99
      %s102 = sadd.s32 %s101, 1
      %p105 = scmp.eq.s32.totalorder %s29, 1
      %p106 = scmp.ne.s32.totalorder %s101, %s103
      %p107 = scmp.eq.s32.totalorder %s29, 0
      %p108 = por %p106, %p107
      %p109 = scmp.ne.s32.totalorder %s101, %s103
      %p110 = scmp.eq.s32.totalorder %s34, 1
      %p111 = por %p109, %p110
      %p112 = scmp.ne.s32.totalorder %s103, %s104
      %p113 = scmp.eq.s32.totalorder %s34, 0
      %p114 = por %p112, %p113
      %p115 = scmp.ne.s32.totalorder %s103, %s104
      %p116 = scmp.eq.s32.totalorder %s35, 1
      %p117 = por %p115, %p116
      %p119 = scmp.ne.s32.totalorder %s104, %s118
      %p120 = scmp.eq.s32.totalorder %s35, 0
      %p121 = por %p119, %p120
      %s123 = sadd.s32 %s122, 1
      %p126 = scmp.eq.s32.totalorder %s29, 1
      %p127 = scmp.ne.s32.totalorder %s122, %s124
      %p128 = scmp.eq.s32.totalorder %s29, 0
      %p129 = por %p127, %p128
      %p130 = scmp.ne.s32.totalorder %s122, %s124
      %p131 = scmp.eq.s32.totalorder %s34, 1
      %p132 = por %p130, %p131
      %p133 = scmp.ne.s32.totalorder %s124, %s125
      %p134 = scmp.eq.s32.totalorder %s34, 0
      %p135 = por %p133, %p134
      %p136 = scmp.ne.s32.totalorder %s124, %s125
      %p137 = scmp.eq.s32.totalorder %s35, 1
      %p138 = por %p136, %p137
      %p140 = scmp.ne.s32.totalorder %s125, %s139
      %p141 = scmp.eq.s32.totalorder %s35, 0
      %p142 = por %p140, %p141
      %s144 = sadd.s32 %s143, 1
      %p147 = scmp.eq.s32.totalorder %s29, 1
      %p148 = scmp.ne.s32.totalorder %s143, %s145
      %p149 = scmp.eq.s32.totalorder %s29, 0
      %p150 = por %p148, %p149
      %p151 = scmp.ne.s32.totalorder %s143, %s145
      %p152 = scmp.eq.s32.totalorder %s34, 1
      %p153 = por %p151, %p152
      %p154 = scmp.ne.s32.totalorder %s145, %s146
      %p155 = scmp.eq.s32.totalorder %s34, 0
      %p156 = por %p154, %p155
      %p157 = scmp.ne.s32.totalorder %s145, %s146
      %p158 = scmp.eq.s32.totalorder %s35, 1
      %p159 = por %p157, %p158
      %p161 = scmp.ne.s32.totalorder %s146, %s160
      %p162 = scmp.eq.s32.totalorder %s35, 0
      %p163 = por %p161, %p162
      %s165 = sadd.s32 %s164, 1
      %p168 = scmp.eq.s32.totalorder %s29, 1
      %p169 = scmp.ne.s32.totalorder %s164, %s166
      %p170 = scmp.eq.s32.totalorder %s29, 0
      %p171 = por %p169, %p170
      %p172 = scmp.ne.s32.totalorder %s164, %s166
      %p173 = scmp.eq.s32.totalorder %s34, 1
      %p174 = por %p172, %p173
      %p175 = scmp.ne.s32.totalorder %s166, %s167
      %p176 = scmp.eq.s32.totalorder %s34, 0
      %p177 = por %p175, %p176
      %p178 = scmp.ne.s32.totalorder %s166, %s167
      %p179 = scmp.eq.s32.totalorder %s35, 1
      %p180 = por %p178, %p179
      %p182 = scmp.ne.s32.totalorder %s167, %s181
      %p183 = scmp.eq.s32.totalorder %s35, 0
      %p184 = por %p182, %p183
      %s186 = sadd.s32 %s185, 1
      %p189 = scmp.eq.s32.totalorder %s29, 1
      %p190 = scmp.ne.s32.totalorder %s185, %s187
      %p191 = scmp.eq.s32.totalorder %s29, 0
      %p192 = por %p190, %p191
      %p193 = scmp.ne.s32.totalorder %s185, %s187
      %p194 = scmp.eq.s32.totalorder %s34, 1
      %p195 = por %p193, %p194
      %p196 = scmp.ne.s32.totalorder %s187, %s188
      %p197 = scmp.eq.s32.totalorder %s34, 0
      %p198 = por %p196, %p197
      %p199 = scmp.ne.s32.totalorder %s187, %s188
      %p200 = scmp.eq.s32.totalorder %s35, 1
      %p201 = por %p199, %p200
      %p203 = scmp.ne.s32.totalorder %s188, %s202
      %p204 = scmp.eq.s32.totalorder %s35, 0
      %p205 = por %p203, %p204
      %s207 = sadd.s32 %s206, 1
      %p210 = scmp.eq.s32.totalorder %s29, 1
      %p211 = scmp.ne.s32.totalorder %s206, %s208
      %p212 = scmp.eq.s32.totalorder %s29, 0
      %p213 = por %p211, %p212
      %p214 = scmp.ne.s32.totalorder %s206, %s208
      %p215 = scmp.eq.s32.totalorder %s34, 1
      %p216 = por %p214, %p215
      %p217 = scmp.ne.s32.totalorder %s208, %s209
      %p218 = scmp.eq.s32.totalorder %s34, 0
      %p219 = por %p217, %p218
      %p220 = scmp.ne.s32.totalorder %s208, %s209
      %p221 = scmp.eq.s32.totalorder %s35, 1
      %p222 = por %p220, %p221
      %p224 = scmp.ne.s32.totalorder %s209, %s223
      %p225 = scmp.eq.s32.totalorder %s35, 0
      %p226 = por %p224, %p225
      %s228 = sadd.s32 %s227, 1
      %p231 = scmp.eq.s32.totalorder %s29, 1
      %p232 = scmp.ne.s32.totalorder %s227, %s229
      %p233 = scmp.eq.s32.totalorder %s29, 0
      %p234 = por %p232, %p233
      %p235 = scmp.ne.s32.totalorder %s227, %s229
      %p236 = scmp.eq.s32.totalorder %s34, 1
      %p237 = por %p235, %p236
      %p238 = scmp.ne.s32.totalorder %s229, %s230
      %p239 = scmp.eq.s32.totalorder %s34, 0
      %p240 = por %p238, %p239
      %p241 = scmp.ne.s32.totalorder %s229, %s230
      %p242 = scmp.eq.s32.totalorder %s35, 1
      %p243 = por %p241, %p242
      %p245 = scmp.ne.s32.totalorder %s230, %s244
      %p246 = scmp.eq.s32.totalorder %s35, 0
      %p247 = por %p245, %p246
      %s249 = sadd.s32 %s248, 1
      %p252 = scmp.eq.s32.totalorder %s29, 1
      %p253 = scmp.ne.s32.totalorder %s248, %s250
      %p254 = scmp.eq.s32.totalorder %s29, 0
      %p255 = por %p253, %p254
      %p256 = scmp.ne.s32.totalorder %s248, %s250
      %p257 = scmp.eq.s32.totalorder %s34, 1
      %p258 = por %p256, %p257
      %p259 = scmp.ne.s32.totalorder %s250, %s251
      %p260 = scmp.eq.s32.totalorder %s34, 0
      %p261 = por %p259, %p260
      %p262 = scmp.ne.s32.totalorder %s250, %s251
      %p263 = scmp.eq.s32.totalorder %s35, 1
      %p264 = por %p262, %p263
      %p266 = scmp.ne.s32.totalorder %s251, %s265
      %p267 = scmp.eq.s32.totalorder %s35, 0
      %p268 = por %p266, %p267
      %s269 = ssub.s32 %s36, %s48
      %s270 = ssub.s32 %s37, %s44
      %s271 = sor.u32 %s269, %s270
      %p272 = scmp.eq.s32.totalorder %s271, 0
      %s274 = sadd.s32 %s273, 1
      %s275 = scalar_select %p272, %s273, %s274
      %p278 = pneg %p272
      %p279 = scmp.eq.s32.totalorder %s29, 1
      %p280 = por %p278, %p279
      %p281 = scmp.ne.s32.totalorder %s273, %s276
      %p282 = scmp.eq.s32.totalorder %s29, 0
      %p283 = por %p281, %p282
      %p284 = scmp.ne.s32.totalorder %s273, %s276
      %p285 = scmp.eq.s32.totalorder %s34, 1
      %p286 = por %p284, %p285
      %p287 = scmp.ne.s32.totalorder %s276, %s277
      %p288 = scmp.eq.s32.totalorder %s34, 0
      %p289 = por %p287, %p288
      %p290 = scmp.ne.s32.totalorder %s276, %s277
      %p291 = scmp.eq.s32.totalorder %s35, 1
      %p292 = por %p290, %p291
      %p294 = scmp.ne.s32.totalorder %s277, %s293
      %p295 = scmp.eq.s32.totalorder %s35, 0
      %p296 = por %p294, %p295
      %p297 = scmp.le.s32.totalorder 1, %s29
      %p298 = scmp.lt.s32.totalorder %s29, 3
      %p299 = pnand %p297, %p298
      %p300 = pneg %p299
      // Predicated region
      $region9: #{tpu_custom_call.1} parent=5 // pred_check
        _
      $region10: #{tpu_custom_call.1} parent=5 // pred_check_branch
        %302 = sbr.rel (%p299) target = $region12
      $region11: #{tpu_custom_call.1} parent=5 // pred_region
        %s303 = ssub.s32 %s29, 1
        // Predicated region
        $region13: #{tpu_custom_call.1} parent=11 // pred_check
          %p304 = pneg %p114
        $region14: #{tpu_custom_call.1} parent=11 // pred_check_branch
          %306 = sbr.rel (%p304) target = $region16
        $region15: #{tpu_custom_call.1} parent=11 // pred_region
          %s308 = ssub.s32 128, 128
          %309 = vsyncadd [#allocation9], %s308
          %s311 = sshll.u32 [#allocation10], 4
          %s312 = int_to_ptr.vmem [resolvable:$true] %s311
          %314 = dma.hbm_to_vmem [thread:$0]  %s2, 128, %s312, [#allocation9]
        $region16: #{tpu_custom_call.1} parent=11 // pred_fallthru
          _
        // Predicated region
        $region17: #{tpu_custom_call.1} parent=11 // pred_check
          %p315 = pneg %p135
        $region18: #{tpu_custom_call.1} parent=11 // pred_check_branch
          %317 = sbr.rel (%p315) target = $region20
        $region19: #{tpu_custom_call.1} parent=11 // pred_region
          %s319 = ssub.s32 32, 32
          %320 = vsyncadd [#allocation12], %s319
          %s322 = sshll.u32 [#allocation11], 4
          %s323 = int_to_ptr.vmem [resolvable:$true] %s322
          %325 = dma.hbm_to_vmem [thread:$0]  %s3, 32, %s323, [#allocation12]
        $region20: #{tpu_custom_call.1} parent=11 // pred_fallthru
          _
        // Predicated region
        $region21: #{tpu_custom_call.1} parent=11 // pred_check
          %p326 = pneg %p156
        $region22: #{tpu_custom_call.1} parent=11 // pred_check_branch
          %328 = sbr.rel (%p326) target = $region24
        $region23: #{tpu_custom_call.1} parent=11 // pred_region
          %s330 = ssub.s32 32, 32
          %331 = vsyncadd [#allocation12], %s330
          %s333 = sshll.u32 [#allocation13], 4
          %s334 = int_to_ptr.vmem [resolvable:$true] %s333
          %336 = dma.hbm_to_vmem [thread:$0]  %s4, 32, %s334, [#allocation12]
        $region24: #{tpu_custom_call.1} parent=11 // pred_fallthru
          _
        // Predicated region
        $region25: #{tpu_custom_call.1} parent=11 // pred_check
          %p337 = pneg %p177
        $region26: #{tpu_custom_call.1} parent=11 // pred_check_branch
          %339 = sbr.rel (%p337) target = $region28
        $region27: #{tpu_custom_call.1} parent=11 // pred_region
          %s341 = ssub.s32 1024, 1024
          %342 = vsyncadd [#allocation15], %s341
          %s343 = sshll.u32 [#allocation14], 4
          %s344 = int_to_ptr.vmem [resolvable:$true] %s343
          %349 = dma.hbm_to_vmem [thread:$0]  %s5, 1024, %s344, [#allocation15], 64, 64, 4
        $region28: #{tpu_custom_call.1} parent=11 // pred_fallthru
          _
        // Predicated region
        $region29: #{tpu_custom_call.1} parent=11 // pred_check
          %p350 = pneg %p198
        $region30: #{tpu_custom_call.1} parent=11 // pred_check_branch
          %352 = sbr.rel (%p350) target = $region32
        $region31: #{tpu_custom_call.1} parent=11 // pred_region
          %s354 = ssub.s32 2048, 2048
          %355 = vsyncadd [#allocation15], %s354
          %s356 = sshll.u32 [#allocation16], 4
          %s357 = int_to_ptr.vmem [resolvable:$true] %s356
          %362 = dma.hbm_to_vmem [thread:$0]  %s6, 2048, %s357, [#allocation15], 128, 128, 8
        $region32: #{tpu_custom_call.1} parent=11 // pred_fallthru
          _
        // Predicated region
        $region33: #{tpu_custom_call.1} parent=11 // pred_check
          %p363 = pneg %p219
        $region34: #{tpu_custom_call.1} parent=11 // pred_check_branch
          %365 = sbr.rel (%p363) target = $region36
        $region35: #{tpu_custom_call.1} parent=11 // pred_region
          %s367 = ssub.s32 1024, 1024
          %368 = vsyncadd [#allocation18], %s367
          %s369 = sshll.u32 [#allocation17], 4
          %s370 = int_to_ptr.vmem [resolvable:$true] %s369
          %375 = dma.hbm_to_vmem [thread:$0]  %s7, 1024, %s370, [#allocation18], 64, 64, 4
        $region36: #{tpu_custom_call.1} parent=11 // pred_fallthru
          _
        // Predicated region
        $region37: #{tpu_custom_call.1} parent=11 // pred_check
          %p376 = pneg %p240
        $region38: #{tpu_custom_call.1} parent=11 // pred_check_branch
          %378 = sbr.rel (%p376) target = $region40
        $region39: #{tpu_custom_call.1} parent=11 // pred_region
          %s380 = ssub.s32 2048, 2048
          %381 = vsyncadd [#allocation18], %s380
          %s382 = sshll.u32 [#allocation19], 4
          %s383 = int_to_ptr.vmem [resolvable:$true] %s382
          %388 = dma.hbm_to_vmem [thread:$0]  %s8, 2048, %s383, [#allocation18], 128, 128, 8
        $region40: #{tpu_custom_call.1} parent=11 // pred_fallthru
          _
        // Predicated region
        $region41: #{tpu_custom_call.1} parent=11 // pred_check
          %p389 = pneg %p261
        $region42: #{tpu_custom_call.1} parent=11 // pred_check_branch
          %391 = sbr.rel (%p389) target = $region44
        $region43: #{tpu_custom_call.1} parent=11 // pred_region
          %s393 = ssub.s32 2048, 2048
          %394 = vsyncadd [#allocation21], %s393
          %s395 = sshll.u32 [#allocation20], 4
          %s396 = int_to_ptr.vmem [resolvable:$true] %s395
          %401 = dma.hbm_to_vmem [thread:$0]  %s9, 2048, %s396, [#allocation21], 64, 64, 4
        $region44: #{tpu_custom_call.1} parent=11 // pred_fallthru
          _
      $region12: #{tpu_custom_call.1} parent=5 // pred_fallthru
        _
      %p402 = scmp.lt.s32.totalorder %s29, 2
      // Predicated region
      $region45: #{tpu_custom_call.1} parent=5 // pred_check
        %p403 = pneg %p402
      $region46: #{tpu_custom_call.1} parent=5 // pred_check_branch
        %405 = sbr.rel (%p403) target = $region48
      $region47: #{tpu_custom_call.1} parent=5 // pred_region
        // Predicated region
        $region49: #{tpu_custom_call.1} parent=47 // pred_check
          %p406 = pneg %p61
        $region50: #{tpu_custom_call.1} parent=47 // pred_check_branch
          %408 = sbr.rel (%p406) target = $region52
        $region51: #{tpu_custom_call.1} parent=47 // pred_region
          %s409 = sand.u32 %s51, 1
          %s410 = scalar_lea.sflag [#allocation6], %s409
          %s411 = sand.u32 %s51, 1
          %s412 = smul.addr %s411, 16
          %s413 = scalar_lea.vmem [#allocation5], %s412
          %s415 = ssub.s32 256, 256
          %416 = vsyncadd %s410, %s415
          %s417 = smul.addr %s36, 2
          %s418 = smul.addr %s417, 128
          %s419 = scalar_lea.hbm %s0, %s418
          %s420 = sshll.u32 %s413, 4
          %s421 = int_to_ptr.vmem [resolvable:$true] %s420
          %426 = dma.hbm_to_vmem [thread:$0]  %s419, 256, %s421, %s410, 128, 128, 8
        $region52: #{tpu_custom_call.1} parent=47 // pred_fallthru
          _
        // Predicated region
        $region53: #{tpu_custom_call.1} parent=47 // pred_check
          %p427 = pneg %p87
        $region54: #{tpu_custom_call.1} parent=47 // pred_check_branch
          %429 = sbr.rel (%p427) target = $region56
        $region55: #{tpu_custom_call.1} parent=47 // pred_region
          %s430 = sand.u32 %s29, 1
          %s431 = scalar_lea.sflag [#allocation9], %s430
          %s432 = sand.u32 %s77, 1
          %s433 = scalar_lea.vmem [#allocation8], %s432
          %s435 = ssub.s32 16, 16
          %436 = vsyncadd %s431, %s435
          %s437 = smul.addr %s36, 16
          %s438 = scalar_lea.hbm %s1, %s437
          %s440 = sshll.u32 %s433, 4
          %s441 = int_to_ptr.vmem [resolvable:$true] %s440
          %443 = dma.hbm_to_vmem [thread:$0]  %s438, 16, %s441, %s431
        $region56: #{tpu_custom_call.1} parent=47 // pred_fallthru
          _
      $region48: #{tpu_custom_call.1} parent=5 // pred_fallthru
        _
      %p444 = scmp.le.s32.totalorder 1, %s29
      %p445 = scmp.lt.s32.totalorder %s29, 3
      %p446 = pnand %p444, %p445
      %p447 = pneg %p446
      // Predicated region
      $region57: #{tpu_custom_call.1} parent=5 // pred_check
        _
      $region58: #{tpu_custom_call.1} parent=5 // pred_check_branch
        %449 = sbr.rel (%p446) target = $region60
      $region59: #{tpu_custom_call.1} parent=5 // pred_region
        %s450 = ssub.s32 %s29, 1
        %s451 = sand.u32 %s54, 1
        %s452 = scalar_lea.sflag [#allocation6], %s451
        %s453 = sand.u32 %s54, 1
        %s454 = smul.addr %s453, 16
        %s455 = scalar_lea.vmem [#allocation5], %s454
        // Predicated region
        $region61: #{tpu_custom_call.1} parent=59 // pred_check
          %p456 = pneg %p67
        $region62: #{tpu_custom_call.1} parent=59 // pred_check_branch
          %458 = sbr.rel (%p456) target = $region64
        $region63: #{tpu_custom_call.1} parent=59 // pred_region
          %459 = dma.done %s452, 256
        $region64: #{tpu_custom_call.1} parent=59 // pred_fallthru
          _
        %s460 = sand.u32 %s34, 1
        %s461 = scalar_lea.sflag [#allocation9], %s460
        %s462 = sand.u32 %s80, 1
        %s463 = scalar_lea.vmem [#allocation8], %s462
        // Predicated region
        $region65: #{tpu_custom_call.1} parent=59 // pred_check
          %p464 = pneg %p93
        $region66: #{tpu_custom_call.1} parent=59 // pred_check_branch
          %466 = sbr.rel (%p464) target = $region68
        $region67: #{tpu_custom_call.1} parent=59 // pred_region
          %467 = dma.done %s461, 16
        $region68: #{tpu_custom_call.1} parent=59 // pred_fallthru
          _
        // Predicated region
        $region69: #{tpu_custom_call.1} parent=59 // pred_check
          %p468 = pneg %p114
        $region70: #{tpu_custom_call.1} parent=59 // pred_check_branch
          %470 = sbr.rel (%p468) target = $region72
        $region71: #{tpu_custom_call.1} parent=59 // pred_region
          %471 = dma.done [#allocation9], 128
        $region72: #{tpu_custom_call.1} parent=59 // pred_fallthru
          _
        // Predicated region
        $region73: #{tpu_custom_call.1} parent=59 // pred_check
          %p472 = pneg %p135
        $region74: #{tpu_custom_call.1} parent=59 // pred_check_branch
          %474 = sbr.rel (%p472) target = $region76
        $region75: #{tpu_custom_call.1} parent=59 // pred_region
          %475 = dma.done [#allocation12], 32
        $region76: #{tpu_custom_call.1} parent=59 // pred_fallthru
          _
        // Predicated region
        $region77: #{tpu_custom_call.1} parent=59 // pred_check
          %p476 = pneg %p156
        $region78: #{tpu_custom_call.1} parent=59 // pred_check_branch
          %478 = sbr.rel (%p476) target = $region80
        $region79: #{tpu_custom_call.1} parent=59 // pred_region
          %479 = dma.done [#allocation12], 32
        $region80: #{tpu_custom_call.1} parent=59 // pred_fallthru
          _
        // Predicated region
        $region81: #{tpu_custom_call.1} parent=59 // pred_check
          %p480 = pneg %p177
        $region82: #{tpu_custom_call.1} parent=59 // pred_check_branch
          %482 = sbr.rel (%p480) target = $region84
        $region83: #{tpu_custom_call.1} parent=59 // pred_region
          %483 = dma.done [#allocation15], 1024
        $region84: #{tpu_custom_call.1} parent=59 // pred_fallthru
          _
        // Predicated region
        $region85: #{tpu_custom_call.1} parent=59 // pred_check
          %p484 = pneg %p198
        $region86: #{tpu_custom_call.1} parent=59 // pred_check_branch
          %486 = sbr.rel (%p484) target = $region88
        $region87: #{tpu_custom_call.1} parent=59 // pred_region
          %487 = dma.done [#allocation15], 2048
        $region88: #{tpu_custom_call.1} parent=59 // pred_fallthru
          _
        // Predicated region
        $region89: #{tpu_custom_call.1} parent=59 // pred_check
          %p488 = pneg %p219
        $region90: #{tpu_custom_call.1} parent=59 // pred_check_branch
          %490 = sbr.rel (%p488) target = $region92
        $region91: #{tpu_custom_call.1} parent=59 // pred_region
          %491 = dma.done [#allocation18], 1024
        $region92: #{tpu_custom_call.1} parent=59 // pred_fallthru
          _
        // Predicated region
        $region93: #{tpu_custom_call.1} parent=59 // pred_check
          %p492 = pneg %p240
        $region94: #{tpu_custom_call.1} parent=59 // pred_check_branch
          %494 = sbr.rel (%p492) target = $region96
        $region95: #{tpu_custom_call.1} parent=59 // pred_region
          %495 = dma.done [#allocation18], 2048
        $region96: #{tpu_custom_call.1} parent=59 // pred_fallthru
          _
        // Predicated region
        $region97: #{tpu_custom_call.1} parent=59 // pred_check
          %p496 = pneg %p261
        $region98: #{tpu_custom_call.1} parent=59 // pred_check_branch
          %498 = sbr.rel (%p496) target = $region100
        $region99: #{tpu_custom_call.1} parent=59 // pred_region
          %499 = dma.done [#allocation21], 2048
        $region100: #{tpu_custom_call.1} parent=59 // pred_fallthru
          _
        %s500 = sand.u32 %s54, 1
        %s501 = scalar_lea.sflag [#allocation6], %s500
        %s502 = sand.u32 %s54, 1
        %s503 = smul.addr %s502, 16
        %s504 = scalar_lea.vmem [#allocation5], %s503
        %p505 = pneg %p67
        %p506 = pneg %p64
        %s507 = sand.u32 %s34, 1
        %s508 = scalar_lea.sflag [#allocation9], %s507
        %s509 = sand.u32 %s80, 1
        %s510 = scalar_lea.vmem [#allocation8], %s509
        %p511 = pneg %p93
        %p512 = pneg %p90
        %p513 = pneg %p114
        %p514 = pneg %p111
        %p515 = pneg %p135
        %p516 = pneg %p132
        %p517 = pneg %p156
        %p518 = pneg %p153
        %p519 = pneg %p177
        %p520 = pneg %p174
        %p521 = pneg %p198
        %p522 = pneg %p195
        %p523 = pneg %p219
        %p524 = pneg %p216
        %p525 = pneg %p240
        %p526 = pneg %p237
        %p527 = pneg %p261
        %p528 = pneg %p258
        %p529 = pneg %p289
        %p530 = pneg %p286
        %s531 = sand.u32 %s276, 1
        %s532 = scalar_lea.sflag [#allocation7], %s531
        %s533 = sand.u32 %s276, 1
        %s534 = smul.addr %s533, 16
        %s535 = scalar_lea.vmem [#allocation22], %s534
        %s536 = smul.u32 2, %s39
        %v538 = vld [vmem:[#allocation10] sm:$0x1]
        %v539 = vld [vmem:[#allocation10 + $0x1] sm:$0x1]
        %p540 = scmp.eq.s32.totalorder %s39, 0
        // Predicated region
        $region101: #{tpu_custom_call.1} parent=59 // pred_check
          %p541 = pneg %p540
        $region102: #{tpu_custom_call.1} parent=59 // pred_check_branch
          %543 = sbr.rel (%p541) target = $region104
        $region103: #{tpu_custom_call.1} parent=59 // pred_region
          %v544 = vld [vmem:[%s455] sm:$0xff]
          %v545 = vld [vmem:[%s455 + $0x8] sm:$0xff]
          %546 = vadd.xlane.f32.xlu0 %v544
          %v547 = vpop.xlane.xlu0 %546
          %548 = vadd.xlane.f32.xlu0 %v545
          %v549 = vpop.xlane.xlu0 %548
          %v550 = vrcp.pop 128.0
          %v551 = vmul.f32 %v547, %v550
          %v552 = vmul.f32 %v549, %v550
          %v553 = vsub.f32 %v544, %v551
          %v554 = vsub.f32 %v545, %v552
          %v555 = vmul.f32 %v553, %v553
          %v556 = vmul.f32 %v554, %v554
          %557 = vadd.xlane.f32.xlu0 %v555
          %v558 = vpop.xlane.xlu0 %557
          %559 = vadd.xlane.f32.xlu0 %v556
          %v560 = vpop.xlane.xlu0 %559
          %v561 = vmul.f32 %v558, 0.007874016
          %v562 = vmul.f32 %v560, 0.007874016
          %v563 = vrsqrt.pop %v561
          %v564 = vmul.f32 %v561, %v563
          %vm565 = vcmp.eq.f32.partialorder %v561, inf
          %v566 = vsel %vm565, %v561, %v564
          %vm567 = vcmp.eq.f32.partialorder %v561, 0.0
          %v568 = vand.u32 %v561, 2147483648
          %v569 = vsel %vm567, %v568, %v566
          %v570 = vrsqrt.pop %v562
          %v571 = vmul.f32 %v562, %v570
          %vm572 = vcmp.eq.f32.partialorder %v562, inf
          %v573 = vsel %vm572, %v562, %v571
          %vm574 = vcmp.eq.f32.partialorder %v562, 0.0
          %v575 = vand.u32 %v562, 2147483648
          %v576 = vsel %vm574, %v575, %v573
          %v577 = vlaneseq
          %v578 = vshrl.u32 %v577, 7
          %v579 = vsub.s32 0, %v578
          %v580 = vrot.slane %v538, %v579
          %v581 = vmul.f32 %v580, %v553
          %v582 = vmul.f32 %v580, %v554
          %v583 = vadd.f32 %v569, 1e-06
          %v584 = vadd.f32 %v576, 1e-06
          %v585 = vrcp.pop %v583
          %v586 = vrcp.pop %v584
          %v587 = vmul.f32 %v581, %v585
          %v588 = vmul.f32 %v582, %v586
          %v589 = vlaneseq
          %v590 = vshrl.u32 %v589, 7
          %v591 = vsub.s32 0, %v590
          %v592 = vrot.slane %v539, %v591
          %v593 = vadd.f32 %v587, %v592
          %v594 = vadd.f32 %v588, %v592
          %595 = vst [vmem:[#allocation2] sm:$0xff] %v593
          %596 = vst [vmem:[#allocation2 + $0x8] sm:$0xff] %v594
          %v597 = vpack.c.bf16 %v594, %v593
          %v598 = vld [vmem:[#allocation16] sm:$0xff]
          %v599 = vld [vmem:[#allocation16 + $0x8] sm:$0xff]
          %v600 = vld [vmem:[#allocation16 + $0x10] sm:$0xff]
          %v601 = vld [vmem:[#allocation16 + $0x18] sm:$0xff]
          %v602 = vld [vmem:[#allocation16 + $0x20] sm:$0xff]
          %v603 = vld [vmem:[#allocation16 + $0x28] sm:$0xff]
          %v604 = vld [vmem:[#allocation16 + $0x30] sm:$0xff]
          %v605 = vld [vmem:[#allocation16 + $0x38] sm:$0xff]
          %v606 = vld [vmem:[#allocation16 + $0x40] sm:$0xff]
          %v607 = vld [vmem:[#allocation16 + $0x48] sm:$0xff]
          %v608 = vld [vmem:[#allocation16 + $0x50] sm:$0xff]
          %v609 = vld [vmem:[#allocation16 + $0x58] sm:$0xff]
          %v610 = vld [vmem:[#allocation16 + $0x60] sm:$0xff]
          %v611 = vld [vmem:[#allocation16 + $0x68] sm:$0xff]
          %v612 = vld [vmem:[#allocation16 + $0x70] sm:$0xff]
          %v613 = vld [vmem:[#allocation16 + $0x78] sm:$0xff]
          %v614 = vld [vmem:[#allocation11] sm:$0x3]
          %v616 = vlaneseq
          %v617 = vshrl.u32 %v616, 7
          %v618 = vsub.s32 0, %v617
          %v619 = vrot.slane %v614, %v618
          %v620 = vlaneseq
          %v621 = vshrl.u32 %v620, 7
          %v622 = vsub.s32 1, %v621
          %v623 = vrot.slane %v614, %v622
          %v642 = vunpack.c.l.b16 %v598
          %v643 = vunpack.c.h.b16 %v598
          %v644 = vunpack.c.l.b16 %v599
          %v645 = vunpack.c.h.b16 %v599
          %v646 = vunpack.c.l.b16 %v600
          %v647 = vunpack.c.h.b16 %v600
          %v648 = vunpack.c.l.b16 %v601
          %v649 = vunpack.c.h.b16 %v601
          %v650 = vunpack.c.l.b16 %v602
          %v651 = vunpack.c.h.b16 %v602
          %v652 = vunpack.c.l.b16 %v603
          %v653 = vunpack.c.h.b16 %v603
          %v654 = vunpack.c.l.b16 %v604
          %v655 = vunpack.c.h.b16 %v604
          %v656 = vunpack.c.l.b16 %v605
          %v657 = vunpack.c.h.b16 %v605
          %v658 = vunpack.c.l.b16 %v606
          %v659 = vunpack.c.h.b16 %v606
          %v660 = vunpack.c.l.b16 %v607
          %v661 = vunpack.c.h.b16 %v607
          %v662 = vunpack.c.l.b16 %v608
          %v663 = vunpack.c.h.b16 %v608
          %v664 = vunpack.c.l.b16 %v609
          %v665 = vunpack.c.h.b16 %v609
          %v666 = vunpack.c.l.b16 %v610
          %v667 = vunpack.c.h.b16 %v610
          %v668 = vunpack.c.l.b16 %v611
          %v669 = vunpack.c.h.b16 %v611
          %v670 = vunpack.c.l.b16 %v612
          %v671 = vunpack.c.h.b16 %v612
          %v672 = vunpack.c.l.b16 %v613
          %v673 = vunpack.c.h.b16 %v613
          %v674 = vpack.c.b16 %v644, %v642
          %v675 = vpack.c.b16 %v645, %v643
          %v676 = vpack.c.b16 %v648, %v646
          %v677 = vpack.c.b16 %v649, %v647
          %v678 = vpack.c.b16 %v652, %v650
          %v679 = vpack.c.b16 %v653, %v651
          %v680 = vpack.c.b16 %v656, %v654
          %v681 = vpack.c.b16 %v657, %v655
          %v682 = vpack.c.b16 %v660, %v658
          %v683 = vpack.c.b16 %v661, %v659
          %v684 = vpack.c.b16 %v664, %v662
          %v685 = vpack.c.b16 %v665, %v663
          %v686 = vpack.c.b16 %v668, %v666
          %v687 = vpack.c.b16 %v669, %v667
          %v688 = vpack.c.b16 %v672, %v670
          %v689 = vpack.c.b16 %v673, %v671
          %706 = vmatprep.subr.bf16.mxu0 %v675
          %707 = vmatpush1.bf16.msra.mxu0 %v674
          %708 = vmatprep.subr.bf16.mxu0 %v677
          %709 = vmatpush1.bf16.msra.mxu0 %v676
          %710 = vmatprep.subr.bf16.mxu0 %v679
          %711 = vmatpush1.bf16.msra.mxu0 %v678
          %712 = vmatprep.subr.bf16.mxu0 %v681
          %713 = vmatpush1.bf16.msra.mxu0 %v680
          %714 = vmatprep.subr.bf16.mxu0 %v683
          %715 = vmatpush1.bf16.msra.mxu0 %v682
          %716 = vmatprep.subr.bf16.mxu0 %v685
          %717 = vmatpush1.bf16.msra.mxu0 %v684
          %718 = vmatprep.subr.bf16.mxu0 %v687
          %719 = vmatpush1.bf16.msra.mxu0 %v686
          %720 = vmatprep.subr.bf16.mxu0 %v689
          %721 = vmatpush1.bf16.msra.mxu0 %v688
          %722 = vmatprep.subr.bf16.mxu0 0
          %723 = vmatpush1.bf16.msra.mxu0 0
          %724 = vmatprep.subr.bf16.mxu0 0
          %725 = vmatpush1.bf16.msra.mxu0 0
          %726 = vmatprep.subr.bf16.mxu0 0
          %727 = vmatpush1.bf16.msra.mxu0 0
          %728 = vmatprep.subr.bf16.mxu0 0
          %729 = vmatpush1.bf16.msra.mxu0 0
          %730 = vmatprep.subr.bf16.mxu0 0
          %731 = vmatpush1.bf16.msra.mxu0 0
          %732 = vmatprep.subr.bf16.mxu0 0
          %733 = vmatpush1.bf16.msra.mxu0 0
          %734 = vmatprep.subr.bf16.mxu0 0
          %735 = vmatpush1.bf16.msra.mxu0 0
          %736 = vmatprep.subr.bf16.mxu0 0
          %737 = vmatpush1.bf16.msra.mxu0 0
          %738 = vmatprep.mubr.bf16.mxu0 0
          %739 = vmatmul.mubr.bf16.gmra.mrb[0].mxu0 %v597
          %v740 = vpop.f32.mrb[0].mxu0
          %v741 = vadd.f32 %v619, %v740
          %v742 = vpop.f32.mrb[0].mxu0
          %v743 = vadd.f32 %v623, %v742
          %v744 = vpop.f32.mrb[0].mxu0
          %v745 = vadd.f32 %v619, %v744
          %v746 = vpop.f32.mrb[0].mxu0
          %v747 = vadd.f32 %v623, %v746
          %748 = vdwg.mxu0
          %v749 = vpack.c.bf16 %v745, %v741
          %v750 = vpack.c.bf16 %v747, %v743
          %751 = vst [vmem:[#allocation3] sm:$0xff] %v749
          %752 = vst [vmem:[#allocation3 + $0x8] sm:$0xff] %v750
        $region104: #{tpu_custom_call.1} parent=59 // pred_fallthru
          _
        %v753 = vld [vmem:[%s455] sm:$0xff]
        %v754 = vld [vmem:[%s455 + $0x8] sm:$0xff]
        %v755 = vld [vmem:[#allocation2] sm:$0xff]
        %v756 = vld [vmem:[#allocation2 + $0x8] sm:$0xff]
        %v757 = vpack.c.bf16 %v756, %v755
        %v758 = vld [vmem:[#allocation14] sm:$0xf]
        %v759 = vld [vmem:[#allocation14 + $0x4] sm:$0xf]
        %v760 = vld [vmem:[#allocation14 + $0x8] sm:$0xf]
        %v761 = vld [vmem:[#allocation14 + $0xc] sm:$0xf]
        %v762 = vld [vmem:[#allocation14 + $0x10] sm:$0xf]
        %v763 = vld [vmem:[#allocation14 + $0x14] sm:$0xf]
        %v764 = vld [vmem:[#allocation14 + $0x18] sm:$0xf]
        %v765 = vld [vmem:[#allocation14 + $0x1c] sm:$0xf]
        %v766 = vld [vmem:[#allocation14 + $0x20] sm:$0xf]
        %v767 = vld [vmem:[#allocation14 + $0x24] sm:$0xf]
        %v768 = vld [vmem:[#allocation14 + $0x28] sm:$0xf]
        %v769 = vld [vmem:[#allocation14 + $0x2c] sm:$0xf]
        %v770 = vld [vmem:[#allocation14 + $0x30] sm:$0xf]
        %v771 = vld [vmem:[#allocation14 + $0x34] sm:$0xf]
        %v772 = vld [vmem:[#allocation14 + $0x38] sm:$0xf]
        %v773 = vld [vmem:[#allocation14 + $0x3c] sm:$0xf]
        %v774 = vld [vmem:[#allocation10 + $0x4] sm:$0x1]
        %v775 = vlaneseq
        %v776 = vshrl.u32 %v775, 7
        %v777 = vsub.s32 0, %v776
        %v778 = vrot.slane %v774, %v777
        %v795 = vunpack.c.l.b16 %v758
        %v796 = vunpack.c.l.b16 %v759
        %v797 = vunpack.c.l.b16 %v760
        %v798 = vunpack.c.l.b16 %v761
        %v799 = vunpack.c.l.b16 %v762
        %v800 = vunpack.c.l.b16 %v763
        %v801 = vunpack.c.l.b16 %v764
        %v802 = vunpack.c.l.b16 %v765
        %v803 = vunpack.c.l.b16 %v766
        %v804 = vunpack.c.l.b16 %v767
        %v805 = vunpack.c.l.b16 %v768
        %v806 = vunpack.c.l.b16 %v769
        %v807 = vunpack.c.l.b16 %v770
        %v808 = vunpack.c.l.b16 %v771
        %v809 = vunpack.c.l.b16 %v772
        %v810 = vunpack.c.l.b16 %v773
        %v811 = vpack.c.b16 %v796, %v795
        %v812 = vpack.c.b16 %v798, %v797
        %v813 = vpack.c.b16 %v800, %v799
        %v814 = vpack.c.b16 %v802, %v801
        %v815 = vpack.c.b16 %v804, %v803
        %v816 = vpack.c.b16 %v806, %v805
        %v817 = vpack.c.b16 %v808, %v807
        %v818 = vpack.c.b16 %v810, %v809
        %827 = vmatprep.subr.bf16.mxu0 0
        %828 = vmatpush1.bf16.msra.mxu0 %v811
        %829 = vmatprep.subr.bf16.mxu0 0
        %830 = vmatpush1.bf16.msra.mxu0 %v812
        %831 = vmatprep.subr.bf16.mxu0 0
        %832 = vmatpush1.bf16.msra.mxu0 %v813
        %833 = vmatprep.subr.bf16.mxu0 0
        %834 = vmatpush1.bf16.msra.mxu0 %v814
        %835 = vmatprep.subr.bf16.mxu0 0
        %836 = vmatpush1.bf16.msra.mxu0 %v815
        %837 = vmatprep.subr.bf16.mxu0 0
        %838 = vmatpush1.bf16.msra.mxu0 %v816
        %839 = vmatprep.subr.bf16.mxu0 0
        %840 = vmatpush1.bf16.msra.mxu0 %v817
        %841 = vmatprep.subr.bf16.mxu0 0
        %842 = vmatpush1.bf16.msra.mxu0 %v818
        %843 = vmatprep.subr.bf16.mxu0 0
        %844 = vmatpush1.bf16.msra.mxu0 0
        %845 = vmatprep.subr.bf16.mxu0 0
        %846 = vmatpush1.bf16.msra.mxu0 0
        %847 = vmatprep.subr.bf16.mxu0 0
        %848 = vmatpush1.bf16.msra.mxu0 0
        %849 = vmatprep.subr.bf16.mxu0 0
        %850 = vmatpush1.bf16.msra.mxu0 0
        %851 = vmatprep.subr.bf16.mxu0 0
        %852 = vmatpush1.bf16.msra.mxu0 0
        %853 = vmatprep.subr.bf16.mxu0 0
        %854 = vmatpush1.bf16.msra.mxu0 0
        %855 = vmatprep.subr.bf16.mxu0 0
        %856 = vmatpush1.bf16.msra.mxu0 0
        %857 = vmatprep.subr.bf16.mxu0 0
        %858 = vmatpush1.bf16.msra.mxu0 0
        %859 = vmatprep.mubr.bf16.mxu0 0
        %860 = vmatmul.mubr.bf16.gmra.mrb[0].mxu0 %v757
        %v861 = vpop.f32.mrb[0].mxu0
        %v862 = vadd.f32 %v778, %v861
        %v863 = vpop.f32.mrb[0].mxu0
        %v864 = vpop.f32.mrb[0].mxu0
        %v865 = vadd.f32 %v778, %v864
        %v866 = vpop.f32.mrb[0].mxu0
        %867 = vdwg.mxu0
        %v868 = vpack.c.bf16 %v865, %v862
        %v869 = vld [vmem:[%s463] sm:$0x1]
        %v871 = vlaneseq
        %v872 = vshrl.u32 %v871, 7
        %v873 = vsub.s32 0, %v872
        %v874 = vrot.slane %v869, %v873
        %v876 = vld [vmem:[#allocation3] sm:$0xff]
        %v877 = vld [vmem:[#allocation3 + $0x8] sm:$0xff]
        %vm878 = vcmask 261120
        %v880 = vsel %vm878, %v868, 0
        %v883 = vsel %vm878, %v876, 0
        %885 = vmatprep.subr.bf16.mxu0 0
        %886 = vmatpush1.bf16.xpose.msra.mxu0 %v883
        %887 = vmatprep.subr.bf16.mxu0 0
        %888 = vmatpush1.bf16.xpose.msra.mxu0 0
        %889 = vmatprep.subr.bf16.mxu0 0
        %890 = vmatpush1.bf16.xpose.msra.mxu0 0
        %891 = vmatprep.subr.bf16.mxu0 0
        %892 = vmatpush1.bf16.xpose.msra.mxu0 0
        %893 = vmatprep.subr.bf16.mxu0 0
        %894 = vmatpush1.bf16.xpose.msra.mxu0 0
        %895 = vmatprep.subr.bf16.mxu0 0
        %896 = vmatpush1.bf16.xpose.msra.mxu0 0
        %897 = vmatprep.subr.bf16.mxu0 0
        %898 = vmatpush1.bf16.xpose.msra.mxu0 0
        %899 = vmatprep.subr.bf16.mxu0 0
        %900 = vmatpush1.bf16.xpose.msra.mxu0 0
        %901 = vmatprep.subr.bf16.mxu0 0
        %902 = vmatpush1.bf16.xpose.msra.mxu0 0
        %903 = vmatprep.subr.bf16.mxu0 0
        %904 = vmatpush1.bf16.xpose.msra.mxu0 0
        %905 = vmatprep.subr.bf16.mxu0 0
        %906 = vmatpush1.bf16.xpose.msra.mxu0 0
        %907 = vmatprep.subr.bf16.mxu0 0
        %908 = vmatpush1.bf16.xpose.msra.mxu0 0
        %909 = vmatprep.subr.bf16.mxu0 0
        %910 = vmatpush1.bf16.xpose.msra.mxu0 0
        %911 = vmatprep.subr.bf16.mxu0 0
        %912 = vmatpush1.bf16.xpose.msra.mxu0 0
        %913 = vmatprep.subr.bf16.mxu0 0
        %914 = vmatpush1.bf16.xpose.msra.mxu0 0
        %915 = vmatprep.subr.bf16.mxu0 0
        %916 = vmatpush1.bf16.xpose.msra.mxu0 0
        %917 = vmatprep.mubr.bf16.mxu0 0
        %918 = vmatmul.mubr.bf16.gmra.mrb[0].mxu0 %v880
        %v919 = vpop.f32.mrb[0].mxu0
        %v920 = vadd.f32 %v874, %v919
        %v921 = vpop.f32.mrb[0].mxu0
        %v922 = vpop.f32.mrb[0].mxu0
        %v923 = vadd.f32 %v874, %v922
        %v924 = vpop.f32.mrb[0].mxu0
        %925 = vdwg.mxu0
        %vm926 = vcmask 130048
        %v927 = vsel %vm926, %v920, -inf
        %928 = vmax.xlane.f32.xlu0 %v927
        %v929 = vpop.xlane.xlu0 %928
        %v930 = vsel %vm926, %v923, -inf
        %931 = vmax.xlane.f32.xlu0 %v930
        %v932 = vpop.xlane.xlu0 %931
        %v933 = vsub.f32 %v920, %v929
        %v934 = vsub.f32 %v923, %v932
        %v935 = vmul.f32 %v933, 1.442695
        %v936 = vpow.pop %v935
        %v937 = vmul.f32 %v934, 1.442695
        %v938 = vpow.pop %v937
        %v939 = vsel %vm926, %v936, 0.0
        %940 = vadd.xlane.f32.xlu0 %v939
        %v941 = vpop.xlane.xlu0 %940
        %v942 = vsel %vm926, %v938, 0.0
        %943 = vadd.xlane.f32.xlu0 %v942
        %v944 = vpop.xlane.xlu0 %943
        %v945 = vrcp.pop %v941
        %v946 = vrcp.pop %v944
        %v947 = vmul.f32 %v936, %v945
        %v948 = vmul.f32 %v938, %v946
        %v949 = vpack.c.bf16 %v948, %v947
        %v951 = vsel %vm926, %v949, 0
        %953 = vmatprep.subr.bf16.mxu0 0
        %954 = vmatpush1.bf16.msra.mxu0 %v877
        %955 = vmatprep.subr.bf16.mxu0 0
        %956 = vmatpush1.bf16.msra.mxu0 0
        %957 = vmatprep.subr.bf16.mxu0 0
        %958 = vmatpush1.bf16.msra.mxu0 0
        %959 = vmatprep.subr.bf16.mxu0 0
        %960 = vmatpush1.bf16.msra.mxu0 0
        %961 = vmatprep.subr.bf16.mxu0 0
        %962 = vmatpush1.bf16.msra.mxu0 0
        %963 = vmatprep.subr.bf16.mxu0 0
        %964 = vmatpush1.bf16.msra.mxu0 0
        %965 = vmatprep.subr.bf16.mxu0 0
        %966 = vmatpush1.bf16.msra.mxu0 0
        %967 = vmatprep.subr.bf16.mxu0 0
        %968 = vmatpush1.bf16.msra.mxu0 0
        %969 = vmatprep.subr.bf16.mxu0 0
        %970 = vmatpush1.bf16.msra.mxu0 0
        %971 = vmatprep.subr.bf16.mxu0 0
        %972 = vmatpush1.bf16.msra.mxu0 0
        %973 = vmatprep.subr.bf16.mxu0 0
        %974 = vmatpush1.bf16.msra.mxu0 0
        %975 = vmatprep.subr.bf16.mxu0 0
        %976 = vmatpush1.bf16.msra.mxu0 0
        %977 = vmatprep.subr.bf16.mxu0 0
        %978 = vmatpush1.bf16.msra.mxu0 0
        %979 = vmatprep.subr.bf16.mxu0 0
        %980 = vmatpush1.bf16.msra.mxu0 0
        %981 = vmatprep.subr.bf16.mxu0 0
        %982 = vmatpush1.bf16.msra.mxu0 0
        %983 = vmatprep.subr.bf16.mxu0 0
        %984 = vmatpush1.bf16.msra.mxu0 0
        %985 = vmatprep.mubr.bf16.mxu0 0
        %986 = vmatmul.mubr.bf16.gmra.mrb[0].mxu0 %v951
        %v987 = vpop.f32.mrb[0].mxu0
        %v988 = vadd.f32 0.0, %v987
        %v989 = vpop.f32.mrb[0].mxu0
        %v990 = vpop.f32.mrb[0].mxu0
        %v991 = vadd.f32 0.0, %v990
        %v992 = vpop.f32.mrb[0].mxu0
        %993 = vdwg.mxu0
        %v994 = vpack.c.bf16 %v991, %v988
        %995 = vst.msk [vmem:[#allocation4] sm:$0xff] %vm878, %v994
        %v996 = vld [vmem:[#allocation3] sm:$0xff]
        %v997 = vld [vmem:[#allocation3 + $0x8] sm:$0xff]
        %999 = vrot.lane.b32.xlu0 %v868, 96
        %v1000 = vpop.permute.xlu0 %999
        %1002 = vrot.lane.b32.xlu0 %v996, 96
        %v1003 = vpop.permute.xlu0 %1002
        %v1005 = vsel %vm878, %v1000, 0
        %v1008 = vsel %vm878, %v1003, 0
        %1010 = vmatprep.subr.bf16.mxu0 0
        %1011 = vmatpush1.bf16.xpose.msra.mxu0 %v1008
        %1012 = vmatprep.subr.bf16.mxu0 0
        %1013 = vmatpush1.bf16.xpose.msra.mxu0 0
        %1014 = vmatprep.subr.bf16.mxu0 0
        %1015 = vmatpush1.bf16.xpose.msra.mxu0 0
        %1016 = vmatprep.subr.bf16.mxu0 0
        %1017 = vmatpush1.bf16.xpose.msra.mxu0 0
        %1018 = vmatprep.subr.bf16.mxu0 0
        %1019 = vmatpush1.bf16.xpose.msra.mxu0 0
        %1020 = vmatprep.subr.bf16.mxu0 0
        %1021 = vmatpush1.bf16.xpose.msra.mxu0 0
        %1022 = vmatprep.subr.bf16.mxu0 0
        %1023 = vmatpush1.bf16.xpose.msra.mxu0 0
        %1024 = vmatprep.subr.bf16.mxu0 0
        %1025 = vmatpush1.bf16.xpose.msra.mxu0 0
        %1026 = vmatprep.subr.bf16.mxu0 0
        %1027 = vmatpush1.bf16.xpose.msra.mxu0 0
        %1028 = vmatprep.subr.bf16.mxu0 0
        %1029 = vmatpush1.bf16.xpose.msra.mxu0 0
        %1030 = vmatprep.subr.bf16.mxu0 0
        %1031 = vmatpush1.bf16.xpose.msra.mxu0 0
        %1032 = vmatprep.subr.bf16.mxu0 0
        %1033 = vmatpush1.bf16.xpose.msra.mxu0 0
        %1034 = vmatprep.subr.bf16.mxu0 0
        %1035 = vmatpush1.bf16.xpose.msra.mxu0 0
        %1036 = vmatprep.subr.bf16.mxu0 0
        %1037 = vmatpush1.bf16.xpose.msra.mxu0 0
        %1038 = vmatprep.subr.bf16.mxu0 0
        %1039 = vmatpush1.bf16.xpose.msra.mxu0 0
        %1040 = vmatprep.subr.bf16.mxu0 0
        %1041 = vmatpush1.bf16.xpose.msra.mxu0 0
        %1042 = vmatprep.mubr.bf16.mxu0 0
        %1043 = vmatmul.mubr.bf16.gmra.mrb[0].mxu0 %v1005
        %v1044 = vpop.f32.mrb[0].mxu0
        %v1045 = vadd.f32 %v874, %v1044
        %v1046 = vpop.f32.mrb[0].mxu0
        %v1047 = vpop.f32.mrb[0].mxu0
        %v1048 = vadd.f32 %v874, %v1047
        %v1049 = vpop.f32.mrb[0].mxu0
        %1050 = vdwg.mxu0
        %v1051 = vsel %vm926, %v1045, -inf
        %1052 = vmax.xlane.f32.xlu0 %v1051
        %v1053 = vpop.xlane.xlu0 %1052
        %v1054 = vsel %vm926, %v1048, -inf
        %1055 = vmax.xlane.f32.xlu0 %v1054
        %v1056 = vpop.xlane.xlu0 %1055
        %v1057 = vsub.f32 %v1045, %v1053
        %v1058 = vsub.f32 %v1048, %v1056
        %v1059 = vmul.f32 %v1057, 1.442695
        %v1060 = vpow.pop %v1059
        %v1061 = vmul.f32 %v1058, 1.442695
        %v1062 = vpow.pop %v1061
        %v1063 = vsel %vm926, %v1060, 0.0
        %1064 = vadd.xlane.f32.xlu0 %v1063
        %v1065 = vpop.xlane.xlu0 %1064
        %v1066 = vsel %vm926, %v1062, 0.0
        %1067 = vadd.xlane.f32.xlu0 %v1066
        %v1068 = vpop.xlane.xlu0 %1067
        %v1069 = vrcp.pop %v1065
        %v1070 = vrcp.pop %v1068
        %v1071 = vmul.f32 %v1060, %v1069
        %v1072 = vmul.f32 %v1062, %v1070
        %v1073 = vpack.c.bf16 %v1072, %v1071
        %1075 = vrot.lane.b32.xlu0 %v997, 96
        %v1076 = vpop.permute.xlu0 %1075
        %v1079 = vsel %vm926, %v1073, 0
        %1081 = vmatprep.subr.bf16.mxu0 0
        %1082 = vmatpush1.bf16.msra.mxu0 %v1076
        %1083 = vmatprep.subr.bf16.mxu0 0
        %1084 = vmatpush1.bf16.msra.mxu0 0
        %1085 = vmatprep.subr.bf16.mxu0 0
        %1086 = vmatpush1.bf16.msra.mxu0 0
        %1087 = vmatprep.subr.bf16.mxu0 0
        %1088 = vmatpush1.bf16.msra.mxu0 0
        %1089 = vmatprep.subr.bf16.mxu0 0
        %1090 = vmatpush1.bf16.msra.mxu0 0
        %1091 = vmatprep.subr.bf16.mxu0 0
        %1092 = vmatpush1.bf16.msra.mxu0 0
        %1093 = vmatprep.subr.bf16.mxu0 0
        %1094 = vmatpush1.bf16.msra.mxu0 0
        %1095 = vmatprep.subr.bf16.mxu0 0
        %1096 = vmatpush1.bf16.msra.mxu0 0
        %1097 = vmatprep.subr.bf16.mxu0 0
        %1098 = vmatpush1.bf16.msra.mxu0 0
        %1099 = vmatprep.subr.bf16.mxu0 0
        %1100 = vmatpush1.bf16.msra.mxu0 0
        %1101 = vmatprep.subr.bf16.mxu0 0
        %1102 = vmatpush1.bf16.msra.mxu0 0
        %1103 = vmatprep.subr.bf16.mxu0 0
        %1104 = vmatpush1.bf16.msra.mxu0 0
        %1105 = vmatprep.subr.bf16.mxu0 0
        %1106 = vmatpush1.bf16.msra.mxu0 0
        %1107 = vmatprep.subr.bf16.mxu0 0
        %1108 = vmatpush1.bf16.msra.mxu0 0
        %1109 = vmatprep.subr.bf16.mxu0 0
        %1110 = vmatpush1.bf16.msra.mxu0 0
        %1111 = vmatprep.subr.bf16.mxu0 0
        %1112 = vmatpush1.bf16.msra.mxu0 0
        %1113 = vmatprep.mubr.bf16.mxu0 0
        %1114 = vmatmul.mubr.bf16.gmra.mrb[0].mxu0 %v1079
        %v1115 = vpop.f32.mrb[0].mxu0
        %v1116 = vadd.f32 0.0, %v1115
        %v1117 = vpop.f32.mrb[0].mxu0
        %v1118 = vpop.f32.mrb[0].mxu0
        %v1119 = vadd.f32 0.0, %v1118
        %v1120 = vpop.f32.mrb[0].mxu0
        %1121 = vdwg.mxu0
        %v1122 = vpack.c.bf16 %v1119, %v1116
        %1124 = vrot.lane.b32.xlu0 %v1122, 32
        %v1125 = vpop.permute.xlu0 %1124
        %vm1127 = vcmask 523520
        %1128 = vst.msk [vmem:[#allocation4] sm:$0xff] %vm1127, %v1125
        %v1129 = vld [vmem:[#allocation3] sm:$0xff]
        %v1130 = vld [vmem:[#allocation3 + $0x8] sm:$0xff]
        %1131 = vrot.lane.b32.xlu0 %v868, 64
        %v1132 = vpop.permute.xlu0 %1131
        %1134 = vrot.lane.b32.xlu0 %v1129, 64
        %v1135 = vpop.permute.xlu0 %1134
        %v1137 = vsel %vm878, %v1132, 0
        %v1140 = vsel %vm878, %v1135, 0
        %1142 = vmatprep.subr.bf16.mxu0 0
        %1143 = vmatpush1.bf16.xpose.msra.mxu0 %v1140
        %1144 = vmatprep.subr.bf16.mxu0 0
        %1145 = vmatpush1.bf16.xpose.msra.mxu0 0
        %1146 = vmatprep.subr.bf16.mxu0 0
        %1147 = vmatpush1.bf16.xpose.msra.mxu0 0
        %1148 = vmatprep.subr.bf16.mxu0 0
        %1149 = vmatpush1.bf16.xpose.msra.mxu0 0
        %1150 = vmatprep.subr.bf16.mxu0 0
        %1151 = vmatpush1.bf16.xpose.msra.mxu0 0
        %1152 = vmatprep.subr.bf16.mxu0 0
        %1153 = vmatpush1.bf16.xpose.msra.mxu0 0
        %1154 = vmatprep.subr.bf16.mxu0 0
        %1155 = vmatpush1.bf16.xpose.msra.mxu0 0
        %1156 = vmatprep.subr.bf16.mxu0 0
        %1157 = vmatpush1.bf16.xpose.msra.mxu0 0
        %1158 = vmatprep.subr.bf16.mxu0 0
        %1159 = vmatpush1.bf16.xpose.msra.mxu0 0
        %1160 = vmatprep.subr.bf16.mxu0 0
        %1161 = vmatpush1.bf16.xpose.msra.mxu0 0
        %1162 = vmatprep.subr.bf16.mxu0 0
        %1163 = vmatpush1.bf16.xpose.msra.mxu0 0
        %1164 = vmatprep.subr.bf16.mxu0 0
        %1165 = vmatpush1.bf16.xpose.msra.mxu0 0
        %1166 = vmatprep.subr.bf16.mxu0 0
        %1167 = vmatpush1.bf16.xpose.msra.mxu0 0
        %1168 = vmatprep.subr.bf16.mxu0 0
        %1169 = vmatpush1.bf16.xpose.msra.mxu0 0
        %1170 = vmatprep.subr.bf16.mxu0 0
        %1171 = vmatpush1.bf16.xpose.msra.mxu0 0
        %1172 = vmatprep.subr.bf16.mxu0 0
        %1173 = vmatpush1.bf16.xpose.msra.mxu0 0
        %1174 = vmatprep.mubr.bf16.mxu0 0
        %1175 = vmatmul.mubr.bf16.gmra.mrb[0].mxu0 %v1137
        %v1176 = vpop.f32.mrb[0].mxu0
        %v1177 = vadd.f32 %v874, %v1176
        %v1178 = vpop.f32.mrb[0].mxu0
        %v1179 = vpop.f32.mrb[0].mxu0
        %v1180 = vadd.f32 %v874, %v1179
        %v1181 = vpop.f32.mrb[0].mxu0
        %1182 = vdwg.mxu0
        %v1183 = vsel %vm926, %v1177, -inf
        %1184 = vmax.xlane.f32.xlu0 %v1183
        %v1185 = vpop.xlane.xlu0 %1184
        %v1186 = vsel %vm926, %v1180, -inf
        %1187 = vmax.xlane.f32.xlu0 %v1186
        %v1188 = vpop.xlane.xlu0 %1187
        %v1189 = vsub.f32 %v1177, %v1185
        %v1190 = vsub.f32 %v1180, %v1188
        %v1191 = vmul.f32 %v1189, 1.442695
        %v1192 = vpow.pop %v1191
        %v1193 = vmul.f32 %v1190, 1.442695
        %v1194 = vpow.pop %v1193
        %v1195 = vsel %vm926, %v1192, 0.0
        %1196 = vadd.xlane.f32.xlu0 %v1195
        %v1197 = vpop.xlane.xlu0 %1196
        %v1198 = vsel %vm926, %v1194, 0.0
        %1199 = vadd.xlane.f32.xlu0 %v1198
        %v1200 = vpop.xlane.xlu0 %1199
        %v1201 = vrcp.pop %v1197
        %v1202 = vrcp.pop %v1200
        %v1203 = vmul.f32 %v1192, %v1201
        %v1204 = vmul.f32 %v1194, %v1202
        %v1205 = vpack.c.bf16 %v1204, %v1203
        %1207 = vrot.lane.b32.xlu0 %v1130, 64
        %v1208 = vpop.permute.xlu0 %1207
        %v1211 = vsel %vm926, %v1205, 0
        %1213 = vmatprep.subr.bf16.mxu0 0
        %1214 = vmatpush1.bf16.msra.mxu0 %v1208
        %1215 = vmatprep.subr.bf16.mxu0 0
        %1216 = vmatpush1.bf16.msra.mxu0 0
        %1217 = vmatprep.subr.bf16.mxu0 0
        %1218 = vmatpush1.bf16.msra.mxu0 0
        %1219 = vmatprep.subr.bf16.mxu0 0
        %1220 = vmatpush1.bf16.msra.mxu0 0
        %1221 = vmatprep.subr.bf16.mxu0 0
        %1222 = vmatpush1.bf16.msra.mxu0 0
        %1223 = vmatprep.subr.bf16.mxu0 0
        %1224 = vmatpush1.bf16.msra.mxu0 0
        %1225 = vmatprep.subr.bf16.mxu0 0
        %1226 = vmatpush1.bf16.msra.mxu0 0
        %1227 = vmatprep.subr.bf16.mxu0 0
        %1228 = vmatpush1.bf16.msra.mxu0 0
        %1229 = vmatprep.subr.bf16.mxu0 0
        %1230 = vmatpush1.bf16.msra.mxu0 0
        %1231 = vmatprep.subr.bf16.mxu0 0
        %1232 = vmatpush1.bf16.msra.mxu0 0
        %1233 = vmatprep.subr.bf16.mxu0 0
        %1234 = vmatpush1.bf16.msra.mxu0 0
        %1235 = vmatprep.subr.bf16.mxu0 0
        %1236 = vmatpush1.bf16.msra.mxu0 0
        %1237 = vmatprep.subr.bf16.mxu0 0
        %1238 = vmatpush1.bf16.msra.mxu0 0
        %1239 = vmatprep.subr.bf16.mxu0 0
        %1240 = vmatpush1.bf16.msra.mxu0 0
        %1241 = vmatprep.subr.bf16.mxu0 0
        %1242 = vmatpush1.bf16.msra.mxu0 0
        %1243 = vmatprep.subr.bf16.mxu0 0
        %1244 = vmatpush1.bf16.msra.mxu0 0
        %1245 = vmatprep.mubr.bf16.mxu0 0
        %1246 = vmatmul.mubr.bf16.gmra.mrb[0].mxu0 %v1211
        %v1247 = vpop.f32.mrb[0].mxu0
        %v1248 = vadd.f32 0.0, %v1247
        %v1249 = vpop.f32.mrb[0].mxu0
        %v1250 = vpop.f32.mrb[0].mxu0
        %v1251 = vadd.f32 0.0, %v1250
        %v1252 = vpop.f32.mrb[0].mxu0
        %1253 = vdwg.mxu0
        %v1254 = vpack.c.bf16 %v1251, %v1248
        %1256 = vrot.lane.b32.xlu0 %v1254, 64
        %v1257 = vpop.permute.xlu0 %1256
        %vm1259 = vcmask 785920
        %1260 = vst.msk [vmem:[#allocation4] sm:$0xff] %vm1259, %v1257
        %v1261 = vld [vmem:[#allocation3] sm:$0xff]
        %v1262 = vld [vmem:[#allocation3 + $0x8] sm:$0xff]
        %1263 = vrot.lane.b32.xlu0 %v868, 32
        %v1264 = vpop.permute.xlu0 %1263
        %1266 = vrot.lane.b32.xlu0 %v1261, 32
        %v1267 = vpop.permute.xlu0 %1266
        %v1269 = vsel %vm878, %v1264, 0
        %v1272 = vsel %vm878, %v1267, 0
        %1274 = vmatprep.subr.bf16.mxu0 0
        %1275 = vmatpush1.bf16.xpose.msra.mxu0 %v1272
        %1276 = vmatprep.subr.bf16.mxu0 0
        %1277 = vmatpush1.bf16.xpose.msra.mxu0 0
        %1278 = vmatprep.subr.bf16.mxu0 0
        %1279 = vmatpush1.bf16.xpose.msra.mxu0 0
        %1280 = vmatprep.subr.bf16.mxu0 0
        %1281 = vmatpush1.bf16.xpose.msra.mxu0 0
        %1282 = vmatprep.subr.bf16.mxu0 0
        %1283 = vmatpush1.bf16.xpose.msra.mxu0 0
        %1284 = vmatprep.subr.bf16.mxu0 0
        %1285 = vmatpush1.bf16.xpose.msra.mxu0 0
        %1286 = vmatprep.subr.bf16.mxu0 0
        %1287 = vmatpush1.bf16.xpose.msra.mxu0 0
        %1288 = vmatprep.subr.bf16.mxu0 0
        %1289 = vmatpush1.bf16.xpose.msra.mxu0 0
        %1290 = vmatprep.subr.bf16.mxu0 0
        %1291 = vmatpush1.bf16.xpose.msra.mxu0 0
        %1292 = vmatprep.subr.bf16.mxu0 0
        %1293 = vmatpush1.bf16.xpose.msra.mxu0 0
        %1294 = vmatprep.subr.bf16.mxu0 0
        %1295 = vmatpush1.bf16.xpose.msra.mxu0 0
        %1296 = vmatprep.subr.bf16.mxu0 0
        %1297 = vmatpush1.bf16.xpose.msra.mxu0 0
        %1298 = vmatprep.subr.bf16.mxu0 0
        %1299 = vmatpush1.bf16.xpose.msra.mxu0 0
        %1300 = vmatprep.subr.bf16.mxu0 0
        %1301 = vmatpush1.bf16.xpose.msra.mxu0 0
        %1302 = vmatprep.subr.bf16.mxu0 0
        %1303 = vmatpush1.bf16.xpose.msra.mxu0 0
        %1304 = vmatprep.subr.bf16.mxu0 0
        %1305 = vmatpush1.bf16.xpose.msra.mxu0 0
        %1306 = vmatprep.mubr.bf16.mxu0 0
        %1307 = vmatmul.mubr.bf16.gmra.mrb[0].mxu0 %v1269
        %v1308 = vpop.f32.mrb[0].mxu0
        %v1309 = vadd.f32 %v874, %v1308
        %v1310 = vpop.f32.mrb[0].mxu0
        %v1311 = vpop.f32.mrb[0].mxu0
        %v1312 = vadd.f32 %v874, %v1311
        %v1313 = vpop.f32.mrb[0].mxu0
        %1314 = vdwg.mxu0
        %v1315 = vsel %vm926, %v1309, -inf
        %1316 = vmax.xlane.f32.xlu0 %v1315
        %v1317 = vpop.xlane.xlu0 %1316
        %v1318 = vsel %vm926, %v1312, -inf
        %1319 = vmax.xlane.f32.xlu0 %v1318
        %v1320 = vpop.xlane.xlu0 %1319
        %v1321 = vsub.f32 %v1309, %v1317
        %v1322 = vsub.f32 %v1312, %v1320
        %v1323 = vmul.f32 %v1321, 1.442695
        %v1324 = vpow.pop %v1323
        %v1325 = vmul.f32 %v1322, 1.442695
        %v1326 = vpow.pop %v1325
        %v1327 = vsel %vm926, %v1324, 0.0
        %1328 = vadd.xlane.f32.xlu0 %v1327
        %v1329 = vpop.xlane.xlu0 %1328
        %v1330 = vsel %vm926, %v1326, 0.0
        %1331 = vadd.xlane.f32.xlu0 %v1330
        %v1332 = vpop.xlane.xlu0 %1331
        %v1333 = vrcp.pop %v1329
        %v1334 = vrcp.pop %v1332
        %v1335 = vmul.f32 %v1324, %v1333
        %v1336 = vmul.f32 %v1326, %v1334
        %v1337 = vpack.c.bf16 %v1336, %v1335
        %1339 = vrot.lane.b32.xlu0 %v1262, 32
        %v1340 = vpop.permute.xlu0 %1339
        %v1343 = vsel %vm926, %v1337, 0
        %1345 = vmatprep.subr.bf16.mxu0 0
        %1346 = vmatpush1.bf16.msra.mxu0 %v1340
        %1347 = vmatprep.subr.bf16.mxu0 0
        %1348 = vmatpush1.bf16.msra.mxu0 0
        %1349 = vmatprep.subr.bf16.mxu0 0
        %1350 = vmatpush1.bf16.msra.mxu0 0
        %1351 = vmatprep.subr.bf16.mxu0 0
        %1352 = vmatpush1.bf16.msra.mxu0 0
        %1353 = vmatprep.subr.bf16.mxu0 0
        %1354 = vmatpush1.bf16.msra.mxu0 0
        %1355 = vmatprep.subr.bf16.mxu0 0
        %1356 = vmatpush1.bf16.msra.mxu0 0
        %1357 = vmatprep.subr.bf16.mxu0 0
        %1358 = vmatpush1.bf16.msra.mxu0 0
        %1359 = vmatprep.subr.bf16.mxu0 0
        %1360 = vmatpush1.bf16.msra.mxu0 0
        %1361 = vmatprep.subr.bf16.mxu0 0
        %1362 = vmatpush1.bf16.msra.mxu0 0
        %1363 = vmatprep.subr.bf16.mxu0 0
        %1364 = vmatpush1.bf16.msra.mxu0 0
        %1365 = vmatprep.subr.bf16.mxu0 0
        %1366 = vmatpush1.bf16.msra.mxu0 0
        %1367 = vmatprep.subr.bf16.mxu0 0
        %1368 = vmatpush1.bf16.msra.mxu0 0
        %1369 = vmatprep.subr.bf16.mxu0 0
        %1370 = vmatpush1.bf16.msra.mxu0 0
        %1371 = vmatprep.subr.bf16.mxu0 0
        %1372 = vmatpush1.bf16.msra.mxu0 0
        %1373 = vmatprep.subr.bf16.mxu0 0
        %1374 = vmatpush1.bf16.msra.mxu0 0
        %1375 = vmatprep.subr.bf16.mxu0 0
        %1376 = vmatpush1.bf16.msra.mxu0 0
        %1377 = vmatprep.mubr.bf16.mxu0 0
        %1378 = vmatmul.mubr.bf16.gmra.mrb[0].mxu0 %v1343
        %v1379 = vpop.f32.mrb[0].mxu0
        %v1380 = vadd.f32 0.0, %v1379
        %v1381 = vpop.f32.mrb[0].mxu0
        %v1382 = vpop.f32.mrb[0].mxu0
        %v1383 = vadd.f32 0.0, %v1382
        %v1384 = vpop.f32.mrb[0].mxu0
        %1385 = vdwg.mxu0
        %v1386 = vpack.c.bf16 %v1383, %v1380
        %1388 = vrot.lane.b32.xlu0 %v1386, 96
        %v1389 = vpop.permute.xlu0 %1388
        %vm1391 = vcmask 1048320
        %1392 = vst.msk [vmem:[#allocation4] sm:$0xff] %vm1391, %v1389
        %v1393 = vld [vmem:[#allocation4] sm:$0xff]
        %v1394 = vld [vmem:[#allocation17] sm:$0xf]
        %v1395 = vld [vmem:[#allocation17 + $0x4] sm:$0xf]
        %v1396 = vld [vmem:[#allocation17 + $0x8] sm:$0xf]
        %v1397 = vld [vmem:[#allocation17 + $0xc] sm:$0xf]
        %v1398 = vld [vmem:[#allocation17 + $0x10] sm:$0xf]
        %v1399 = vld [vmem:[#allocation17 + $0x14] sm:$0xf]
        %v1400 = vld [vmem:[#allocation17 + $0x18] sm:$0xf]
        %v1401 = vld [vmem:[#allocation17 + $0x1c] sm:$0xf]
        %v1402 = vld [vmem:[#allocation17 + $0x20] sm:$0xf]
        %v1403 = vld [vmem:[#allocation17 + $0x24] sm:$0xf]
        %v1404 = vld [vmem:[#allocation17 + $0x28] sm:$0xf]
        %v1405 = vld [vmem:[#allocation17 + $0x2c] sm:$0xf]
        %v1406 = vld [vmem:[#allocation17 + $0x30] sm:$0xf]
        %v1407 = vld [vmem:[#allocation17 + $0x34] sm:$0xf]
        %v1408 = vld [vmem:[#allocation17 + $0x38] sm:$0xf]
        %v1409 = vld [vmem:[#allocation17 + $0x3c] sm:$0xf]
        %v1410 = vld [vmem:[#allocation10 + $0x5] sm:$0x1]
        %v1411 = vlaneseq
        %v1412 = vshrl.u32 %v1411, 7
        %v1413 = vsub.s32 0, %v1412
        %v1414 = vrot.slane %v1410, %v1413
        %v1431 = vunpack.c.l.b16 %v1394
        %v1432 = vunpack.c.l.b16 %v1395
        %v1433 = vunpack.c.l.b16 %v1396
        %v1434 = vunpack.c.l.b16 %v1397
        %v1435 = vunpack.c.l.b16 %v1398
        %v1436 = vunpack.c.l.b16 %v1399
        %v1437 = vunpack.c.l.b16 %v1400
        %v1438 = vunpack.c.l.b16 %v1401
        %v1439 = vunpack.c.l.b16 %v1402
        %v1440 = vunpack.c.l.b16 %v1403
        %v1441 = vunpack.c.l.b16 %v1404
        %v1442 = vunpack.c.l.b16 %v1405
        %v1443 = vunpack.c.l.b16 %v1406
        %v1444 = vunpack.c.l.b16 %v1407
        %v1445 = vunpack.c.l.b16 %v1408
        %v1446 = vunpack.c.l.b16 %v1409
        %v1447 = vpack.c.b16 %v1432, %v1431
        %v1448 = vpack.c.b16 %v1434, %v1433
        %v1449 = vpack.c.b16 %v1436, %v1435
        %v1450 = vpack.c.b16 %v1438, %v1437
        %v1451 = vpack.c.b16 %v1440, %v1439
        %v1452 = vpack.c.b16 %v1442, %v1441
        %v1453 = vpack.c.b16 %v1444, %v1443
        %v1454 = vpack.c.b16 %v1446, %v1445
        %1463 = vmatprep.subr.bf16.mxu0 0
        %1464 = vmatpush1.bf16.msra.mxu0 %v1447
        %1465 = vmatprep.subr.bf16.mxu0 0
        %1466 = vmatpush1.bf16.msra.mxu0 %v1448
        %1467 = vmatprep.subr.bf16.mxu0 0
        %1468 = vmatpush1.bf16.msra.mxu0 %v1449
        %1469 = vmatprep.subr.bf16.mxu0 0
        %1470 = vmatpush1.bf16.msra.mxu0 %v1450
        %1471 = vmatprep.subr.bf16.mxu0 0
        %1472 = vmatpush1.bf16.msra.mxu0 %v1451
        %1473 = vmatprep.subr.bf16.mxu0 0
        %1474 = vmatpush1.bf16.msra.mxu0 %v1452
        %1475 = vmatprep.subr.bf16.mxu0 0
        %1476 = vmatpush1.bf16.msra.mxu0 %v1453
        %1477 = vmatprep.subr.bf16.mxu0 0
        %1478 = vmatpush1.bf16.msra.mxu0 %v1454
        %1479 = vmatprep.subr.bf16.mxu0 0
        %1480 = vmatpush1.bf16.msra.mxu0 0
        %1481 = vmatprep.subr.bf16.mxu0 0
        %1482 = vmatpush1.bf16.msra.mxu0 0
        %1483 = vmatprep.subr.bf16.mxu0 0
        %1484 = vmatpush1.bf16.msra.mxu0 0
        %1485 = vmatprep.subr.bf16.mxu0 0
        %1486 = vmatpush1.bf16.msra.mxu0 0
        %1487 = vmatprep.subr.bf16.mxu0 0
        %1488 = vmatpush1.bf16.msra.mxu0 0
        %1489 = vmatprep.subr.bf16.mxu0 0
        %1490 = vmatpush1.bf16.msra.mxu0 0
        %1491 = vmatprep.subr.bf16.mxu0 0
        %1492 = vmatpush1.bf16.msra.mxu0 0
        %1493 = vmatprep.subr.bf16.mxu0 0
        %1494 = vmatpush1.bf16.msra.mxu0 0
        %1495 = vmatprep.mubr.bf16.mxu0 0
        %1496 = vmatmul.mubr.bf16.gmra.mrb[0].mxu0 %v1393
        %v1497 = vpop.f32.mrb[0].mxu0
        %v1498 = vadd.f32 %v1414, %v1497
        %v1499 = vpop.f32.mrb[0].mxu0
        %v1500 = vpop.f32.mrb[0].mxu0
        %v1501 = vadd.f32 %v1414, %v1500
        %v1502 = vpop.f32.mrb[0].mxu0
        %1503 = vdwg.mxu0
        %v1504 = vadd.f32 %v753, %v1498
        %v1505 = vadd.f32 %v754, %v1501
        %v1506 = vld [vmem:[#allocation10 + $0x2] sm:$0x1]
        %v1507 = vld [vmem:[#allocation10 + $0x3] sm:$0x1]
        %1508 = vadd.xlane.f32.xlu0 %v1504
        %v1509 = vpop.xlane.xlu0 %1508
        %1510 = vadd.xlane.f32.xlu0 %v1505
        %v1511 = vpop.xlane.xlu0 %1510
        %v1512 = vrcp.pop 128.0
        %v1513 = vmul.f32 %v1509, %v1512
        %v1514 = vmul.f32 %v1511, %v1512
        %v1515 = vsub.f32 %v1504, %v1513
        %v1516 = vsub.f32 %v1505, %v1514
        %v1517 = vmul.f32 %v1515, %v1515
        %v1518 = vmul.f32 %v1516, %v1516
        %1519 = vadd.xlane.f32.xlu0 %v1517
        %v1520 = vpop.xlane.xlu0 %1519
        %1521 = vadd.xlane.f32.xlu0 %v1518
        %v1522 = vpop.xlane.xlu0 %1521
        %v1523 = vmul.f32 %v1520, 0.007874016
        %v1524 = vmul.f32 %v1522, 0.007874016
        %v1525 = vrsqrt.pop %v1523
        %v1526 = vmul.f32 %v1523, %v1525
        %vm1527 = vcmp.eq.f32.partialorder %v1523, inf
        %v1528 = vsel %vm1527, %v1523, %v1526
        %vm1529 = vcmp.eq.f32.partialorder %v1523, 0.0
        %v1530 = vand.u32 %v1523, 2147483648
        %v1531 = vsel %vm1529, %v1530, %v1528
        %v1532 = vrsqrt.pop %v1524
        %v1533 = vmul.f32 %v1524, %v1532
        %vm1534 = vcmp.eq.f32.partialorder %v1524, inf
        %v1535 = vsel %vm1534, %v1524, %v1533
        %vm1536 = vcmp.eq.f32.partialorder %v1524, 0.0
        %v1537 = vand.u32 %v1524, 2147483648
        %v1538 = vsel %vm1536, %v1537, %v1535
        %v1539 = vlaneseq
        %v1540 = vshrl.u32 %v1539, 7
        %v1541 = vsub.s32 0, %v1540
        %v1542 = vrot.slane %v1506, %v1541
        %v1543 = vmul.f32 %v1542, %v1515
        %v1544 = vmul.f32 %v1542, %v1516
        %v1545 = vadd.f32 %v1531, 1e-06
        %v1546 = vadd.f32 %v1538, 1e-06
        %v1547 = vrcp.pop %v1545
        %v1548 = vrcp.pop %v1546
        %v1549 = vmul.f32 %v1543, %v1547
        %v1550 = vmul.f32 %v1544, %v1548
        %v1551 = vlaneseq
        %v1552 = vshrl.u32 %v1551, 7
        %v1553 = vsub.s32 0, %v1552
        %v1554 = vrot.slane %v1507, %v1553
        %v1555 = vadd.f32 %v1549, %v1554
        %v1556 = vadd.f32 %v1550, %v1554
        %v1557 = vpack.c.bf16 %v1556, %v1555
        %v1558 = vld [vmem:[#allocation19] sm:$0xff]
        %v1559 = vld [vmem:[#allocation19 + $0x8] sm:$0xff]
        %v1560 = vld [vmem:[#allocation19 + $0x10] sm:$0xff]
        %v1561 = vld [vmem:[#allocation19 + $0x18] sm:$0xff]
        %v1562 = vld [vmem:[#allocation19 + $0x20] sm:$0xff]
        %v1563 = vld [vmem:[#allocation19 + $0x28] sm:$0xff]
        %v1564 = vld [vmem:[#allocation19 + $0x30] sm:$0xff]
        %v1565 = vld [vmem:[#allocation19 + $0x38] sm:$0xff]
        %v1566 = vld [vmem:[#allocation19 + $0x40] sm:$0xff]
        %v1567 = vld [vmem:[#allocation19 + $0x48] sm:$0xff]
        %v1568 = vld [vmem:[#allocation19 + $0x50] sm:$0xff]
        %v1569 = vld [vmem:[#allocation19 + $0x58] sm:$0xff]
        %v1570 = vld [vmem:[#allocation19 + $0x60] sm:$0xff]
        %v1571 = vld [vmem:[#allocation19 + $0x68] sm:$0xff]
        %v1572 = vld [vmem:[#allocation19 + $0x70] sm:$0xff]
        %v1573 = vld [vmem:[#allocation19 + $0x78] sm:$0xff]
        %v1574 = vld [vmem:[#allocation13] sm:$0x3]
        %v1576 = vlaneseq
        %v1577 = vshrl.u32 %v1576, 7
        %v1578 = vsub.s32 0, %v1577
        %v1579 = vrot.slane %v1574, %v1578
        %v1580 = vlaneseq
        %v1581 = vshrl.u32 %v1580, 7
        %v1582 = vsub.s32 1, %v1581
        %v1583 = vrot.slane %v1574, %v1582
        %v1602 = vunpack.c.l.b16 %v1558
        %v1603 = vunpack.c.h.b16 %v1558
        %v1604 = vunpack.c.l.b16 %v1559
        %v1605 = vunpack.c.h.b16 %v1559
        %v1606 = vunpack.c.l.b16 %v1560
        %v1607 = vunpack.c.h.b16 %v1560
        %v1608 = vunpack.c.l.b16 %v1561
        %v1609 = vunpack.c.h.b16 %v1561
        %v1610 = vunpack.c.l.b16 %v1562
        %v1611 = vunpack.c.h.b16 %v1562
        %v1612 = vunpack.c.l.b16 %v1563
        %v1613 = vunpack.c.h.b16 %v1563
        %v1614 = vunpack.c.l.b16 %v1564
        %v1615 = vunpack.c.h.b16 %v1564
        %v1616 = vunpack.c.l.b16 %v1565
        %v1617 = vunpack.c.h.b16 %v1565
        %v1618 = vunpack.c.l.b16 %v1566
        %v1619 = vunpack.c.h.b16 %v1566
        %v1620 = vunpack.c.l.b16 %v1567
        %v1621 = vunpack.c.h.b16 %v1567
        %v1622 = vunpack.c.l.b16 %v1568
        %v1623 = vunpack.c.h.b16 %v1568
        %v1624 = vunpack.c.l.b16 %v1569
        %v1625 = vunpack.c.h.b16 %v1569
        %v1626 = vunpack.c.l.b16 %v1570
        %v1627 = vunpack.c.h.b16 %v1570
        %v1628 = vunpack.c.l.b16 %v1571
        %v1629 = vunpack.c.h.b16 %v1571
        %v1630 = vunpack.c.l.b16 %v1572
        %v1631 = vunpack.c.h.b16 %v1572
        %v1632 = vunpack.c.l.b16 %v1573
        %v1633 = vunpack.c.h.b16 %v1573
        %v1634 = vpack.c.b16 %v1604, %v1602
        %v1635 = vpack.c.b16 %v1605, %v1603
        %v1636 = vpack.c.b16 %v1608, %v1606
        %v1637 = vpack.c.b16 %v1609, %v1607
        %v1638 = vpack.c.b16 %v1612, %v1610
        %v1639 = vpack.c.b16 %v1613, %v1611
        %v1640 = vpack.c.b16 %v1616, %v1614
        %v1641 = vpack.c.b16 %v1617, %v1615
        %v1642 = vpack.c.b16 %v1620, %v1618
        %v1643 = vpack.c.b16 %v1621, %v1619
        %v1644 = vpack.c.b16 %v1624, %v1622
        %v1645 = vpack.c.b16 %v1625, %v1623
        %v1646 = vpack.c.b16 %v1628, %v1626
        %v1647 = vpack.c.b16 %v1629, %v1627
        %v1648 = vpack.c.b16 %v1632, %v1630
        %v1649 = vpack.c.b16 %v1633, %v1631
        %1666 = vmatprep.subr.bf16.mxu0 %v1635
        %1667 = vmatpush1.bf16.msra.mxu0 %v1634
        %1668 = vmatprep.subr.bf16.mxu0 %v1637
        %1669 = vmatpush1.bf16.msra.mxu0 %v1636
        %1670 = vmatprep.subr.bf16.mxu0 %v1639
        %1671 = vmatpush1.bf16.msra.mxu0 %v1638
        %1672 = vmatprep.subr.bf16.mxu0 %v1641
        %1673 = vmatpush1.bf16.msra.mxu0 %v1640
        %1674 = vmatprep.subr.bf16.mxu0 %v1643
        %1675 = vmatpush1.bf16.msra.mxu0 %v1642
        %1676 = vmatprep.subr.bf16.mxu0 %v1645
        %1677 = vmatpush1.bf16.msra.mxu0 %v1644
        %1678 = vmatprep.subr.bf16.mxu0 %v1647
        %1679 = vmatpush1.bf16.msra.mxu0 %v1646
        %1680 = vmatprep.subr.bf16.mxu0 %v1649
        %1681 = vmatpush1.bf16.msra.mxu0 %v1648
        %1682 = vmatprep.subr.bf16.mxu0 0
        %1683 = vmatpush1.bf16.msra.mxu0 0
        %1684 = vmatprep.subr.bf16.mxu0 0
        %1685 = vmatpush1.bf16.msra.mxu0 0
        %1686 = vmatprep.subr.bf16.mxu0 0
        %1687 = vmatpush1.bf16.msra.mxu0 0
        %1688 = vmatprep.subr.bf16.mxu0 0
        %1689 = vmatpush1.bf16.msra.mxu0 0
        %1690 = vmatprep.subr.bf16.mxu0 0
        %1691 = vmatpush1.bf16.msra.mxu0 0
        %1692 = vmatprep.subr.bf16.mxu0 0
        %1693 = vmatpush1.bf16.msra.mxu0 0
        %1694 = vmatprep.subr.bf16.mxu0 0
        %1695 = vmatpush1.bf16.msra.mxu0 0
        %1696 = vmatprep.subr.bf16.mxu0 0
        %1697 = vmatpush1.bf16.msra.mxu0 0
        %1698 = vmatprep.mubr.bf16.mxu0 0
        %1699 = vmatmul.mubr.bf16.gmra.mrb[0].mxu0 %v1557
        %v1700 = vpop.f32.mrb[0].mxu0
        %v1701 = vadd.f32 %v1579, %v1700
        %v1702 = vpop.f32.mrb[0].mxu0
        %v1703 = vadd.f32 %v1583, %v1702
        %v1704 = vpop.f32.mrb[0].mxu0
        %v1705 = vadd.f32 %v1579, %v1704
        %v1706 = vpop.f32.mrb[0].mxu0
        %v1707 = vadd.f32 %v1583, %v1706
        %1708 = vdwg.mxu0
        %v1709 = vmax.f32 %v1701, 0.0
        %v1710 = vmax.f32 %v1703, 0.0
        %v1711 = vmax.f32 %v1705, 0.0
        %v1712 = vmax.f32 %v1707, 0.0
        %v1713 = vpack.c.bf16 %v1711, %v1709
        %v1714 = vpack.c.bf16 %v1712, %v1710
        %v1715 = vld [vmem:[#allocation20] sm:$0xf]
        %v1716 = vld [vmem:[#allocation20 + $0x4] sm:$0xf]
        %v1717 = vld [vmem:[#allocation20 + $0x8] sm:$0xf]
        %v1718 = vld [vmem:[#allocation20 + $0xc] sm:$0xf]
        %v1719 = vld [vmem:[#allocation20 + $0x10] sm:$0xf]
        %v1720 = vld [vmem:[#allocation20 + $0x14] sm:$0xf]
        %v1721 = vld [vmem:[#allocation20 + $0x18] sm:$0xf]
        %v1722 = vld [vmem:[#allocation20 + $0x1c] sm:$0xf]
        %v1723 = vld [vmem:[#allocation20 + $0x20] sm:$0xf]
        %v1724 = vld [vmem:[#allocation20 + $0x24] sm:$0xf]
        %v1725 = vld [vmem:[#allocation20 + $0x28] sm:$0xf]
        %v1726 = vld [vmem:[#allocation20 + $0x2c] sm:$0xf]
        %v1727 = vld [vmem:[#allocation20 + $0x30] sm:$0xf]
        %v1728 = vld [vmem:[#allocation20 + $0x34] sm:$0xf]
        %v1729 = vld [vmem:[#allocation20 + $0x38] sm:$0xf]
        %v1730 = vld [vmem:[#allocation20 + $0x3c] sm:$0xf]
        %v1731 = vld [vmem:[#allocation20 + $0x40] sm:$0xf]
        %v1732 = vld [vmem:[#allocation20 + $0x44] sm:$0xf]
        %v1733 = vld [vmem:[#allocation20 + $0x48] sm:$0xf]
        %v1734 = vld [vmem:[#allocation20 + $0x4c] sm:$0xf]
        %v1735 = vld [vmem:[#allocation20 + $0x50] sm:$0xf]
        %v1736 = vld [vmem:[#allocation20 + $0x54] sm:$0xf]
        %v1737 = vld [vmem:[#allocation20 + $0x58] sm:$0xf]
        %v1738 = vld [vmem:[#allocation20 + $0x5c] sm:$0xf]
        %v1739 = vld [vmem:[#allocation20 + $0x60] sm:$0xf]
        %v1740 = vld [vmem:[#allocation20 + $0x64] sm:$0xf]
        %v1741 = vld [vmem:[#allocation20 + $0x68] sm:$0xf]
        %v1742 = vld [vmem:[#allocation20 + $0x6c] sm:$0xf]
        %v1743 = vld [vmem:[#allocation20 + $0x70] sm:$0xf]
        %v1744 = vld [vmem:[#allocation20 + $0x74] sm:$0xf]
        %v1745 = vld [vmem:[#allocation20 + $0x78] sm:$0xf]
        %v1746 = vld [vmem:[#allocation20 + $0x7c] sm:$0xf]
        %v1747 = vld [vmem:[#allocation10 + $0x6] sm:$0x1]
        %v1748 = vlaneseq
        %v1749 = vshrl.u32 %v1748, 7
        %v1750 = vsub.s32 0, %v1749
        %v1751 = vrot.slane %v1747, %v1750
        %v1784 = vunpack.c.l.b16 %v1715
        %v1785 = vunpack.c.l.b16 %v1716
        %v1786 = vunpack.c.l.b16 %v1717
        %v1787 = vunpack.c.l.b16 %v1718
        %v1788 = vunpack.c.l.b16 %v1719
        %v1789 = vunpack.c.l.b16 %v1720
        %v1790 = vunpack.c.l.b16 %v1721
        %v1791 = vunpack.c.l.b16 %v1722
        %v1792 = vunpack.c.l.b16 %v1723
        %v1793 = vunpack.c.l.b16 %v1724
        %v1794 = vunpack.c.l.b16 %v1725
        %v1795 = vunpack.c.l.b16 %v1726
        %v1796 = vunpack.c.l.b16 %v1727
        %v1797 = vunpack.c.l.b16 %v1728
        %v1798 = vunpack.c.l.b16 %v1729
        %v1799 = vunpack.c.l.b16 %v1730
        %v1800 = vunpack.c.l.b16 %v1731
        %v1801 = vunpack.c.l.b16 %v1732
        %v1802 = vunpack.c.l.b16 %v1733
        %v1803 = vunpack.c.l.b16 %v1734
        %v1804 = vunpack.c.l.b16 %v1735
        %v1805 = vunpack.c.l.b16 %v1736
        %v1806 = vunpack.c.l.b16 %v1737
        %v1807 = vunpack.c.l.b16 %v1738
        %v1808 = vunpack.c.l.b16 %v1739
        %v1809 = vunpack.c.l.b16 %v1740
        %v1810 = vunpack.c.l.b16 %v1741
        %v1811 = vunpack.c.l.b16 %v1742
        %v1812 = vunpack.c.l.b16 %v1743
        %v1813 = vunpack.c.l.b16 %v1744
        %v1814 = vunpack.c.l.b16 %v1745
        %v1815 = vunpack.c.l.b16 %v1746
        %v1816 = vpack.c.b16 %v1785, %v1784
        %v1817 = vpack.c.b16 %v1787, %v1786
        %v1818 = vpack.c.b16 %v1789, %v1788
        %v1819 = vpack.c.b16 %v1791, %v1790
        %v1820 = vpack.c.b16 %v1793, %v1792
        %v1821 = vpack.c.b16 %v1795, %v1794
        %v1822 = vpack.c.b16 %v1797, %v1796
        %v1823 = vpack.c.b16 %v1799, %v1798
        %v1824 = vpack.c.b16 %v1801, %v1800
        %v1825 = vpack.c.b16 %v1803, %v1802
        %v1826 = vpack.c.b16 %v1805, %v1804
        %v1827 = vpack.c.b16 %v1807, %v1806
        %v1828 = vpack.c.b16 %v1809, %v1808
        %v1829 = vpack.c.b16 %v1811, %v1810
        %v1830 = vpack.c.b16 %v1813, %v1812
        %v1831 = vpack.c.b16 %v1815, %v1814
        %1848 = vmatprep.subr.bf16.mxu0 0
        %1849 = vmatpush1.bf16.msra.mxu0 %v1816
        %1850 = vmatprep.subr.bf16.mxu0 0
        %1851 = vmatpush1.bf16.msra.mxu0 %v1817
        %1852 = vmatprep.subr.bf16.mxu0 0
        %1853 = vmatpush1.bf16.msra.mxu0 %v1818
        %1854 = vmatprep.subr.bf16.mxu0 0
        %1855 = vmatpush1.bf16.msra.mxu0 %v1819
        %1856 = vmatprep.subr.bf16.mxu0 0
        %1857 = vmatpush1.bf16.msra.mxu0 %v1820
        %1858 = vmatprep.subr.bf16.mxu0 0
        %1859 = vmatpush1.bf16.msra.mxu0 %v1821
        %1860 = vmatprep.subr.bf16.mxu0 0
        %1861 = vmatpush1.bf16.msra.mxu0 %v1822
        %1862 = vmatprep.subr.bf16.mxu0 0
        %1863 = vmatpush1.bf16.msra.mxu0 %v1823
        %1864 = vmatprep.subr.bf16.mxu0 0
        %1865 = vmatpush1.bf16.msra.mxu0 %v1824
        %1866 = vmatprep.subr.bf16.mxu0 0
        %1867 = vmatpush1.bf16.msra.mxu0 %v1825
        %1868 = vmatprep.subr.bf16.mxu0 0
        %1869 = vmatpush1.bf16.msra.mxu0 %v1826
        %1870 = vmatprep.subr.bf16.mxu0 0
        %1871 = vmatpush1.bf16.msra.mxu0 %v1827
        %1872 = vmatprep.subr.bf16.mxu0 0
        %1873 = vmatpush1.bf16.msra.mxu0 %v1828
        %1874 = vmatprep.subr.bf16.mxu0 0
        %1875 = vmatpush1.bf16.msra.mxu0 %v1829
        %1876 = vmatprep.subr.bf16.mxu0 0
        %1877 = vmatpush1.bf16.msra.mxu0 %v1830
        %1878 = vmatprep.subr.bf16.mxu0 0
        %1879 = vmatpush1.bf16.msra.mxu0 %v1831
        %1880 = vmatprep.mubr.bf16.mxu0 %v1714
        %1881 = vmatmul.mubr.bf16.gmra.mrb[0].mxu0 %v1713
        %v1882 = vpop.f32.mrb[0].mxu0
        %v1883 = vadd.f32 %v1751, %v1882
        %v1884 = vpop.f32.mrb[0].mxu0
        %v1885 = vpop.f32.mrb[0].mxu0
        %v1886 = vadd.f32 %v1751, %v1885
        %v1887 = vpop.f32.mrb[0].mxu0
        %1888 = vdwg.mxu0
        %v1889 = vadd.f32 %v1504, %v1883
        %v1890 = vadd.f32 %v1505, %v1886
        %1891 = vst [vmem:[%s535] sm:$0xff] %v1889
        %1892 = vst [vmem:[%s535 + $0x8] sm:$0xff] %v1890
        %s1893 = sand.u32 %s276, 1
        %s1894 = scalar_lea.sflag [#allocation7], %s1893
        %s1895 = sand.u32 %s276, 1
        %s1896 = smul.addr %s1895, 16
        %s1897 = scalar_lea.vmem [#allocation22], %s1896
        // Predicated region
        $region105: #{tpu_custom_call.1} parent=59 // pred_check
          %p1898 = pneg %p286
        $region106: #{tpu_custom_call.1} parent=59 // pred_check_branch
          %1900 = sbr.rel (%p1898) target = $region108
        $region107: #{tpu_custom_call.1} parent=59 // pred_region
          %s1901 = smul.u32 2, %s39
          %s1903 = ssub.s32 256, 256
          %1904 = vsyncadd %s1894, %s1903
          %s1905 = smul.addr %s38, 2
          %s1906 = sadd.s32 %s1901, %s1905
          %s1907 = smul.addr %s1906, 128
          %s1908 = scalar_lea.hbm %s10, %s1907
          %s1909 = sshll.u32 %s1897, 4
          %s1910 = int_to_ptr.vmem [resolvable:$true] %s1909
          %1915 = dma.vmem_to_hbm [thread:$0]  %s1910, 256, %s1908, %s1894, 128, 128, 8
        $region108: #{tpu_custom_call.1} parent=59 // pred_fallthru
          _
      $region60: #{tpu_custom_call.1} parent=5 // pred_fallthru
        _
      %p1916 = scmp.le.s32.totalorder 2, %s29
      // Predicated region
      $region109: #{tpu_custom_call.1} parent=5 // pred_check
        %p1917 = pneg %p1916
      $region110: #{tpu_custom_call.1} parent=5 // pred_check_branch
        %1919 = sbr.rel (%p1917) target = $region112
      $region111: #{tpu_custom_call.1} parent=5 // pred_region
        %s1920 = ssub.s32 %s29, 2
        // Predicated region
        $region113: #{tpu_custom_call.1} parent=111 // pred_check
          %p1921 = pneg %p292
        $region114: #{tpu_custom_call.1} parent=111 // pred_check_branch
          %1923 = sbr.rel (%p1921) target = $region116
        $region115: #{tpu_custom_call.1} parent=111 // pred_region
          %s1924 = sand.u32 %s277, 1
          %s1925 = scalar_lea.sflag [#allocation7], %s1924
          %s1926 = sand.u32 %s277, 1
          %s1927 = smul.addr %s1926, 16
          %s1928 = scalar_lea.vmem [#allocation22], %s1927
          %1929 = dma.done %s1925, 256
        $region116: #{tpu_custom_call.1} parent=111 // pred_fallthru
          _
      $region112: #{tpu_custom_call.1} parent=5 // pred_fallthru
        _
    $region6: #{tpu_custom_call.1} parent=1 // loop_footer
      %s33 = sadd.s32 1, %s29
    $region7: #{tpu_custom_call.1} parent=1 // loop_footer_branch
      %28 = sbr.rel target = $region3
    $region8: #{tpu_custom_call.1} parent=1 // loop_exit
      _
    %1930 = vsyncpa [#allocation6], 1
    %s1931 = scalar_lea.sflag [#allocation6], 1
    %1932 = vsyncpa %s1931, 1
    %1933 = vsyncpa [#allocation9], 1
    %s1934 = scalar_lea.sflag [#allocation9], 1
    %1935 = vsyncpa %s1934, 1
    %1936 = vsyncpa [#allocation12], 1
    %1937 = vsyncpa [#allocation15], 1
    %1938 = vsyncpa [#allocation18], 1
    %1939 = vsyncpa [#allocation21], 1
    %1940 = vsyncpa [#allocation7], 1
    %s1941 = scalar_lea.sflag [#allocation7], 1
    %1942 = vsyncpa %s1941, 1

</llo_original>
